<compile_context>
chip_gen: v7x
topology: tpu7x:2x2x1
jax: 0.10.0
libtpu: 0.0.40
codegen_flags: <defaults>
</compile_context>

<pallas_src>
import jax
import jax.numpy as jnp
from jax import lax
from jax.experimental import pallas as pl
from jax.experimental.pallas import tpu as pltpu


_LAYER_DEFS = [  # (Cin, Cout, K, stride)
    (1, 16, 3, 2),
    (16, 16, 3, 1),
    (16, 128, 3, 2),
    (128, 128, 3, 1),
    (128, 192, 3, 2),
]
_C2 = _LAYER_DEFS[1][1]      # 16
_C4 = _LAYER_DEFS[3][1]      # 128
_C5 = _LAYER_DEFS[4][1]      # 192
_C5_PAD = 256                # lane-dense padding for the final store


def _silu(v):
    return v * jax.nn.sigmoid(v)


def _even_row_selector(n_out, n_in, dtype):
    """(n_out, n_in) 0/1 matrix S with S[i, 2*i] = 1 (row downsample-by-2)."""
    r = jnp.arange(n_out, dtype=jnp.int32)[:, None]
    c = jnp.arange(n_in, dtype=jnp.int32)[None, :]
    return (c == 2 * r).astype(dtype)


def _dynamics_kernel(lhs1_ref, sel3_ref, sel5_ref,
                     w1_ref, b1_ref, w2_ref, b2_ref, w3_ref, b3_ref,
                     w4_ref, b4_ref, w5_ref, b5_ref,
                     o_ref,
                     p2_ref, p3_ref, p4_ref, p5_ref):
    f32 = jnp.float32
    bf16 = jnp.bfloat16
    l1 = p2_ref.shape[0] - 2          # L // 2
    l3 = p4_ref.shape[0] - 2          # L // 4
    c2 = p2_ref.shape[1]              # 16
    c4 = p4_ref.shape[1]              # 128

    # ---- halo-only zeroing (interiors are fully overwritten below) ---------
    z2 = jnp.zeros((1, c2), p2_ref.dtype)
    z4 = jnp.zeros((1, c4), p4_ref.dtype)
    p2_ref[0:1, :] = z2
    p2_ref[l1 + 1:l1 + 2, :] = z2
    p3_ref[0:1, :] = z2
    p3_ref[l1 + 1:l1 + 2, :] = z2
    p4_ref[0:1, :] = z4
    p4_ref[l3 + 1:l3 + 2, :] = z4
    p5_ref[0:1, :] = z4
    p5_ref[l3 + 1:l3 + 2, :] = z4

    # ---- layer 1: Conv1d(1, 16, k=3, s=2) + SiLU  (f32 VPU broadcast MACs) --
    t = lhs1_ref[0]                                           # (l1, 3) im2row taps
    y1 = (t[:, 0:1] * w1_ref[0:1, :]
          + t[:, 1:2] * w1_ref[1:2, :]
          + t[:, 2:3] * w1_ref[2:3, :]) + b1_ref[...]
    p2_ref[1:1 + l1, :] = _silu(y1).astype(p2_ref.dtype)

    # ---- layer 2: Conv1d(16, 16, k=3, s=1) + SiLU — ONE im2row matmul ------
    lhs2 = jnp.concatenate(
        [p2_ref[0:l1, :], p2_ref[1:1 + l1, :], p2_ref[2:2 + l1, :]], axis=-1)
    y2 = jnp.dot(lhs2, w2_ref[...], preferred_element_type=f32) + b2_ref[...]
    p3_ref[1:1 + l1, :] = _silu(y2).astype(p3_ref.dtype)

    # ---- layer 3: Conv1d(16, 128, k=3, s=2) + SiLU --------------------------
    # Reassociated stride-2: select the kept im2row ROWS first with a tiny 0/1
    # matmul, then run the wide (48 -> 128) matmul on only l3 rows.
    lhs3f = jnp.concatenate(
        [p3_ref[0:l1, :], p3_ref[1:1 + l1, :], p3_ref[2:2 + l1, :]], axis=-1)
    lhs3 = jnp.dot(sel3_ref[...], lhs3f,
                   preferred_element_type=f32).astype(bf16)       # (l3, 48)
    y3 = jnp.dot(lhs3, w3_ref[...], preferred_element_type=f32) + b3_ref[...]
    p4_ref[1:1 + l3, :] = _silu(y3).astype(p4_ref.dtype)

    # ---- layer 4: Conv1d(128, 128, k=3, s=1) + SiLU — ONE im2row matmul ----
    lhs4 = jnp.concatenate(
        [p4_ref[0:l3, :], p4_ref[1:1 + l3, :], p4_ref[2:2 + l3, :]], axis=-1)
    y4 = jnp.dot(lhs4, w4_ref[...], preferred_element_type=f32) + b4_ref[...]
    p5_ref[1:1 + l3, :] = _silu(y4).astype(p5_ref.dtype)

    # ---- layer 5: Conv1d(128, 192->256pad, k=3, s=2), no SiLU --------------
    lhs5f = jnp.concatenate(
        [p5_ref[0:l3, :], p5_ref[1:1 + l3, :], p5_ref[2:2 + l3, :]], axis=-1)
    lhs5 = jnp.dot(sel5_ref[...], lhs5f,
                   preferred_element_type=f32).astype(bf16)       # (l5, 384)
    y5 = jnp.dot(lhs5, w5_ref[...], preferred_element_type=f32) + b5_ref[...]
    o_ref[0] = y5.astype(o_ref.dtype)                             # (l5, 256)


def prepare_params(params):
    """Hoist all weight transposes / flattens / casts out of the forward path."""
    def flat(w, dtype):  # (Cout, Cin, K) -> (K*Cin, Cout), tap-major rows
        cout, cin, k = w.shape
        return jnp.transpose(w, (2, 1, 0)).reshape(k * cin, cout).astype(dtype)

    (w1, b1), (w2, b2), (w3, b3), (w4, b4), (w5, b5) = params
    W1 = jnp.transpose(w1[:, 0, :], (1, 0)).astype(jnp.float32)        # (3, 16)
    W2 = flat(w2, jnp.bfloat16)                                        # (48, 16)
    W3 = flat(w3, jnp.bfloat16)                                        # (48, 128)
    W4 = flat(w4, jnp.bfloat16)                                        # (384, 128)
    w5p = jnp.pad(w5, ((0, _C5_PAD - _C5), (0, 0), (0, 0)))            # Cout 192->256
    W5 = flat(w5p, jnp.bfloat16)                                       # (384, 256)
    B1 = b1.reshape(1, -1).astype(jnp.float32)
    B2 = b2.reshape(1, -1).astype(jnp.float32)
    B3 = b3.reshape(1, -1).astype(jnp.float32)
    B4 = b4.reshape(1, -1).astype(jnp.float32)
    B5 = jnp.pad(b5, (0, _C5_PAD - _C5)).reshape(1, -1).astype(jnp.float32)
    return (W1, B1, W2, B2, W3, B3, W4, B4, W5, B5)


@jax.jit
def dynamics_extractor_forward(prepared, x_ncl):
    """x_ncl: (B, 1, L) -> (B, 192, L // 8), matching the PyTorch module."""
    W1, B1, W2, B2, W3, B3, W4, B4, W5, B5 = prepared
    bsz, _, L = x_ncl.shape
    assert L % 8 == 0, "L must be divisible by 8"
    l1, l3, l5 = L // 2, L // 4, L // 8

    # Layer-1 im2row built in the wrapper (Cin == 1), absorbing the NCL->NLC
    # transpose: lhs1[b, i, k] = x_pad[b, 2*i + k].
    xp = jnp.pad(x_ncl[:, 0, :], ((0, 0), (1, 1)))               # (B, L+2)
    t01 = xp[:, 0:2 * l1].reshape(bsz, l1, 2)                    # taps 0, 1
    t2 = xp[:, 2:2 * l1 + 2].reshape(bsz, l1, 2)[:, :, 0:1]      # tap 2
    lhs1 = jnp.concatenate([t01, t2], axis=-1).astype(jnp.float32)   # (B, l1, 3)

    # 0/1 even-row selectors, hoisted out of the kernel (constant inputs).
    # TODO(synk): replace with an L-tiled grid (2-row halos) before scaling L.
    sel3 = _even_row_selector(l3, l1, jnp.bfloat16)              # (l3, l1)
    sel5 = _even_row_selector(l5, l3, jnp.bfloat16)              # (l5, l3)

    const_ins = (sel3, sel5, W1, B1, W2, B2, W3, B3, W4, B4, W5, B5)
    in_specs = [pl.BlockSpec((1, l1, 3), lambda b: (b, 0, 0))]
    in_specs += [pl.BlockSpec(a.shape, lambda b, n=a.ndim: (0,) * n)
                 for a in const_ins]

    out = pl.pallas_call(
        _dynamics_kernel,
        out_shape=jax.ShapeDtypeStruct((bsz, l5, _C5_PAD), jnp.float32),
        grid_spec=pltpu.PrefetchScalarGridSpec(
            num_scalar_prefetch=0,
            grid=(bsz,),                     # batch axis -> megacore parallel
            in_specs=in_specs,
            out_specs=pl.BlockSpec((1, l5, _C5_PAD), lambda b: (b, 0, 0)),
            scratch_shapes=[
                pltpu.VMEM((l1 + 2, _C2), jnp.bfloat16),      # padded silu(y1)
                pltpu.VMEM((l1 + 2, _C2), jnp.bfloat16),      # padded silu(y2)
                pltpu.VMEM((l3 + 2, _C4), jnp.bfloat16),      # padded silu(y3)
                pltpu.VMEM((l3 + 2, _C4), jnp.bfloat16),      # padded silu(y4)
            ]),
        compiler_params=pltpu.CompilerParams(
            dimension_semantics=("parallel",),
            vmem_limit_bytes=32 * 1024 * 1024),
    )(lhs1, *const_ins)

    # Drop the lane padding (256 -> 192) and return PyTorch NCL layout.
    # (Skip this transpose if the downstream consumer accepts NLC.)
    return jnp.transpose(out[:, :, :_C5], (0, 2, 1))


# ----------------------------------------------------------------------------
# Deterministic synthetic params + pure-JAX reference for correctness checking
# ----------------------------------------------------------------------------
def init_params(key):
    """PyTorch-style uniform fan-in init, deterministic."""
    params = []
    for i, (cin, cout, k, _) in enumerate(_LAYER_DEFS):
        kw, kb = jax.random.split(jax.random.fold_in(key, i))
        bound = 1.0 / float(cin * k) ** 0.5
        w = jax.random.uniform(kw, (cout, cin, k), jnp.float32, -bound, bound)
        b = jax.random.uniform(kb, (cout,), jnp.float32, -bound, bound)
        params.append((w, b))
    return params


def _forward_ref(params, x_ncl):
    x = x_ncl
    for i, ((w, b), (_, _, _, s)) in enumerate(zip(params, _LAYER_DEFS)):
        x = lax.conv_general_dilated(
            x, w, window_strides=(s,), padding=[(1, 1)],
            dimension_numbers=("NCH", "OIH", "NCH")) + b[None, :, None]
        if i < len(params) - 1:
            x = x * jax.nn.sigmoid(x)
    return x


if __name__ == "__main__":
    key = jax.random.PRNGKey(0)
    pkey, xkey = jax.random.split(key)
    params = init_params(pkey)
    prepared = prepare_params(params)        # one-time weight prep (hoisted)

    B, L = 2, 64
    x = jax.random.normal(xkey, (B, 1, L), jnp.float32)   # PyTorch NCL input

    out = jax.block_until_ready(dynamics_extractor_forward(prepared, x))
    ref = jax.block_until_ready(_forward_ref(params, x))

    assert out.shape == (B, 192, L // 8), out.shape
    # Layers 2-5 use bf16 MXU operands (per perf guidance) with f32 accum, so
    # compare against the f32 reference with a correspondingly relaxed tol.
    err = float(jnp.max(jnp.abs(out - ref)))
    assert err < 2e-2, err
    print("KERNEL_OK")
</pallas_src>

<mosaic_0001>
module attributes {stable_mosaic.version = 11 : i64} {
  func.func @_dynamics_kernel(%arg0: i32, %arg1: memref<1x32x3xf32, #tpu.memory_space<vmem>>, %arg2: memref<16x32xbf16, #tpu.memory_space<vmem>>, %arg3: memref<8x16xbf16, #tpu.memory_space<vmem>>, %arg4: memref<3x16xf32, #tpu.memory_space<vmem>>, %arg5: memref<1x16xf32, #tpu.memory_space<vmem>>, %arg6: memref<48x16xbf16, #tpu.memory_space<vmem>>, %arg7: memref<1x16xf32, #tpu.memory_space<vmem>>, %arg8: memref<48x128xbf16, #tpu.memory_space<vmem>>, %arg9: memref<1x128xf32, #tpu.memory_space<vmem>>, %arg10: memref<384x128xbf16, #tpu.memory_space<vmem>>, %arg11: memref<1x128xf32, #tpu.memory_space<vmem>>, %arg12: memref<384x256xbf16, #tpu.memory_space<vmem>>, %arg13: memref<1x256xf32, #tpu.memory_space<vmem>>, %arg14: memref<1x8x256xf32, #tpu.memory_space<vmem>>, %arg15: memref<34x16xbf16, #tpu.memory_space<vmem>>, %arg16: memref<34x16xbf16, #tpu.memory_space<vmem>>, %arg17: memref<18x128xbf16, #tpu.memory_space<vmem>>, %arg18: memref<18x128xbf16, #tpu.memory_space<vmem>>) attributes {dimension_semantics = [#tpu.dimension_semantics<parallel>], iteration_bounds = array<i64: 2>, scalar_prefetch = 0 : i64, scratch_operands = 4 : i64, tpu.core_type = #tpu.core_type<tc>, window_params = [{transform_indices = @transform_0, window_bounds = array<i64: 1, 32, 3>}, {pipeline_mode = #tpu.pipeline_mode<synchronous>, transform_indices = @transform_1, window_bounds = array<i64: 16, 32>}, {pipeline_mode = #tpu.pipeline_mode<synchronous>, transform_indices = @transform_2, window_bounds = array<i64: 8, 16>}, {pipeline_mode = #tpu.pipeline_mode<synchronous>, transform_indices = @transform_3, window_bounds = array<i64: 3, 16>}, {pipeline_mode = #tpu.pipeline_mode<synchronous>, transform_indices = @transform_4, window_bounds = array<i64: 1, 16>}, {pipeline_mode = #tpu.pipeline_mode<synchronous>, transform_indices = @transform_5, window_bounds = array<i64: 48, 16>}, {pipeline_mode = #tpu.pipeline_mode<synchronous>, transform_indices = @transform_6, window_bounds = array<i64: 1, 16>}, {pipeline_mode = #tpu.pipeline_mode<synchronous>, transform_indices = @transform_7, window_bounds = array<i64: 48, 128>}, {pipeline_mode = #tpu.pipeline_mode<synchronous>, transform_indices = @transform_8, window_bounds = array<i64: 1, 128>}, {pipeline_mode = #tpu.pipeline_mode<synchronous>, transform_indices = @transform_9, window_bounds = array<i64: 384, 128>}, {pipeline_mode = #tpu.pipeline_mode<synchronous>, transform_indices = @transform_10, window_bounds = array<i64: 1, 128>}, {pipeline_mode = #tpu.pipeline_mode<synchronous>, transform_indices = @transform_11, window_bounds = array<i64: 384, 256>}, {pipeline_mode = #tpu.pipeline_mode<synchronous>, transform_indices = @transform_12, window_bounds = array<i64: 1, 256>}, {transform_indices = @transform_13, window_bounds = array<i64: 1, 8, 256>}]} {
    %cst = arith.constant 0.000000e+00 : bf16
    %0 = vector.broadcast %cst : bf16 to vector<1x16xbf16>
    %cst_0 = arith.constant 0.000000e+00 : bf16
    %1 = vector.broadcast %cst_0 : bf16 to vector<1x128xbf16>
    %c0 = arith.constant 0 : index
    %c0_1 = arith.constant 0 : index
    %2 = vector.load %arg15[%c0, %c0_1] : memref<34x16xbf16, #tpu.memory_space<vmem>>, vector<1x16xbf16>
    tpu.vector_store %arg15[%c0, %c0_1], %0 {strides = array<i32>} : memref<34x16xbf16, #tpu.memory_space<vmem>>, vector<1x16xbf16>,
    %c33 = arith.constant 33 : index
    %c0_2 = arith.constant 0 : index
    %3 = vector.load %arg15[%c33, %c0_2] : memref<34x16xbf16, #tpu.memory_space<vmem>>, vector<1x16xbf16>
    tpu.vector_store %arg15[%c33, %c0_2], %0 {strides = array<i32>} : memref<34x16xbf16, #tpu.memory_space<vmem>>, vector<1x16xbf16>,
    %c0_3 = arith.constant 0 : index
    %c0_4 = arith.constant 0 : index
    %4 = vector.load %arg16[%c0_3, %c0_4] : memref<34x16xbf16, #tpu.memory_space<vmem>>, vector<1x16xbf16>
    tpu.vector_store %arg16[%c0_3, %c0_4], %0 {strides = array<i32>} : memref<34x16xbf16, #tpu.memory_space<vmem>>, vector<1x16xbf16>,
    %c33_5 = arith.constant 33 : index
    %c0_6 = arith.constant 0 : index
    %5 = vector.load %arg16[%c33_5, %c0_6] : memref<34x16xbf16, #tpu.memory_space<vmem>>, vector<1x16xbf16>
    tpu.vector_store %arg16[%c33_5, %c0_6], %0 {strides = array<i32>} : memref<34x16xbf16, #tpu.memory_space<vmem>>, vector<1x16xbf16>,
    %c0_7 = arith.constant 0 : index
    %c0_8 = arith.constant 0 : index
    %6 = vector.load %arg17[%c0_7, %c0_8] : memref<18x128xbf16, #tpu.memory_space<vmem>>, vector<1x128xbf16>
    tpu.vector_store %arg17[%c0_7, %c0_8], %1 {strides = array<i32>} : memref<18x128xbf16, #tpu.memory_space<vmem>>, vector<1x128xbf16>,
    %c17 = arith.constant 17 : index
    %c0_9 = arith.constant 0 : index
    %7 = vector.load %arg17[%c17, %c0_9] : memref<18x128xbf16, #tpu.memory_space<vmem>>, vector<1x128xbf16>
    tpu.vector_store %arg17[%c17, %c0_9], %1 {strides = array<i32>} : memref<18x128xbf16, #tpu.memory_space<vmem>>, vector<1x128xbf16>,
    %c0_10 = arith.constant 0 : index
    %c0_11 = arith.constant 0 : index
    %8 = vector.load %arg18[%c0_10, %c0_11] : memref<18x128xbf16, #tpu.memory_space<vmem>>, vector<1x128xbf16>
    tpu.vector_store %arg18[%c0_10, %c0_11], %1 {strides = array<i32>} : memref<18x128xbf16, #tpu.memory_space<vmem>>, vector<1x128xbf16>,
    %c17_12 = arith.constant 17 : index
    %c0_13 = arith.constant 0 : index
    %9 = vector.load %arg18[%c17_12, %c0_13] : memref<18x128xbf16, #tpu.memory_space<vmem>>, vector<1x128xbf16>
    tpu.vector_store %arg18[%c17_12, %c0_13], %1 {strides = array<i32>} : memref<18x128xbf16, #tpu.memory_space<vmem>>, vector<1x128xbf16>,
    %c0_14 = arith.constant 0 : index
    %c0_15 = arith.constant 0 : index
    %c0_16 = arith.constant 0 : index
    %10 = vector.load %arg1[%c0_14, %c0_15, %c0_16] : memref<1x32x3xf32, #tpu.memory_space<vmem>>, vector<1x32x3xf32>
    %11 = vector.shape_cast %10 : vector<1x32x3xf32> to vector<32x3xf32>
    %12 = vector.extract_strided_slice %11 {offsets = [0, 0], sizes = [32, 1], strides = [1, 1]} : vector<32x3xf32> to vector<32x1xf32>
    %c0_17 = arith.constant 0 : index
    %c0_18 = arith.constant 0 : index
    %13 = vector.load %arg4[%c0_17, %c0_18] : memref<3x16xf32, #tpu.memory_space<vmem>>, vector<1x16xf32>
    %14 = vector.broadcast %12 : vector<32x1xf32> to vector<32x16xf32>
    %15 = vector.broadcast %13 : vector<1x16xf32> to vector<32x16xf32>
    %16 = arith.mulf %14, %15 : vector<32x16xf32>
    %17 = vector.extract_strided_slice %11 {offsets = [0, 1], sizes = [32, 1], strides = [1, 1]} : vector<32x3xf32> to vector<32x1xf32>
    %c1 = arith.constant 1 : index
    %c0_19 = arith.constant 0 : index
    %18 = vector.load %arg4[%c1, %c0_19] : memref<3x16xf32, #tpu.memory_space<vmem>>, vector<1x16xf32>
    %19 = vector.broadcast %17 : vector<32x1xf32> to vector<32x16xf32>
    %20 = vector.broadcast %18 : vector<1x16xf32> to vector<32x16xf32>
    %21 = arith.mulf %19, %20 : vector<32x16xf32>
    %22 = arith.addf %16, %21 : vector<32x16xf32>
    %23 = vector.extract_strided_slice %11 {offsets = [0, 2], sizes = [32, 1], strides = [1, 1]} : vector<32x3xf32> to vector<32x1xf32>
    %c2 = arith.constant 2 : index
    %c0_20 = arith.constant 0 : index
    %24 = vector.load %arg4[%c2, %c0_20] : memref<3x16xf32, #tpu.memory_space<vmem>>, vector<1x16xf32>
    %25 = vector.broadcast %23 : vector<32x1xf32> to vector<32x16xf32>
    %26 = vector.broadcast %24 : vector<1x16xf32> to vector<32x16xf32>
    %27 = arith.mulf %25, %26 : vector<32x16xf32>
    %28 = arith.addf %22, %27 : vector<32x16xf32>
    %c0_21 = arith.constant 0 : index
    %c0_22 = arith.constant 0 : index
    %29 = vector.load %arg5[%c0_21, %c0_22] : memref<1x16xf32, #tpu.memory_space<vmem>>, vector<1x16xf32>
    %30 = vector.broadcast %29 : vector<1x16xf32> to vector<32x16xf32>
    %31 = arith.addf %28, %30 : vector<32x16xf32>
    %32 = arith.negf %31 : vector<32x16xf32>
    %33 = math.exp %32 : vector<32x16xf32>
    %cst_23 = arith.constant 1.000000e+00 : f32
    %34 = vector.broadcast %cst_23 : f32 to vector<32x16xf32>
    %35 = arith.addf %34, %33 : vector<32x16xf32>
    %36 = arith.divf %34, %35 : vector<32x16xf32>
    %37 = arith.mulf %31, %36 : vector<32x16xf32>
    %38 = arith.truncf %37 : vector<32x16xf32> to vector<32x16xbf16>
    %c1_24 = arith.constant 1 : index
    %c0_25 = arith.constant 0 : index
    %39 = vector.load %arg15[%c1_24, %c0_25] : memref<34x16xbf16, #tpu.memory_space<vmem>>, vector<32x16xbf16>
    tpu.vector_store %arg15[%c1_24, %c0_25], %38 {strides = array<i32>} : memref<34x16xbf16, #tpu.memory_space<vmem>>, vector<32x16xbf16>,
    %c0_26 = arith.constant 0 : index
    %c0_27 = arith.constant 0 : index
    %40 = vector.load %arg15[%c0_26, %c0_27] : memref<34x16xbf16, #tpu.memory_space<vmem>>, vector<32x16xbf16>
    %c1_28 = arith.constant 1 : index
    %c0_29 = arith.constant 0 : index
    %41 = vector.load %arg15[%c1_28, %c0_29] : memref<34x16xbf16, #tpu.memory_space<vmem>>, vector<32x16xbf16>
    %c2_30 = arith.constant 2 : index
    %c0_31 = arith.constant 0 : index
    %42 = vector.load %arg15[%c2_30, %c0_31] : memref<34x16xbf16, #tpu.memory_space<vmem>>, vector<32x16xbf16>
    %43 = tpu.concatenate %40, %41, %42 in 1 : vector<32x16xbf16>, vector<32x16xbf16>, vector<32x16xbf16> -> vector<32x48xbf16>
    %c0_32 = arith.constant 0 : index
    %c0_33 = arith.constant 0 : index
    %44 = vector.load %arg6[%c0_32, %c0_33] : memref<48x16xbf16, #tpu.memory_space<vmem>>, vector<48x16xbf16>
    %cst_34 = arith.constant dense<0.000000e+00> : vector<32x16xf32>
    %45 = tpu.matmul %43, %44, %cst_34 {dimension_numbers = #tpu.dot_dimension_numbers<[1], [0], [0], [1], [0, 0, 1, 1], [], []>} : vector<32x48xbf16>, vector<48x16xbf16>, vector<32x16xf32> -> vector<32x16xf32>
    %c0_35 = arith.constant 0 : index
    %c0_36 = arith.constant 0 : index
    %46 = vector.load %arg7[%c0_35, %c0_36] : memref<1x16xf32, #tpu.memory_space<vmem>>, vector<1x16xf32>
    %47 = vector.broadcast %46 : vector<1x16xf32> to vector<32x16xf32>
    %48 = arith.addf %45, %47 : vector<32x16xf32>
    %49 = arith.negf %48 : vector<32x16xf32>
    %50 = math.exp %49 : vector<32x16xf32>
    %cst_37 = arith.constant 1.000000e+00 : f32
    %51 = vector.broadcast %cst_37 : f32 to vector<32x16xf32>
    %52 = arith.addf %51, %50 : vector<32x16xf32>
    %53 = arith.divf %51, %52 : vector<32x16xf32>
    %54 = arith.mulf %48, %53 : vector<32x16xf32>
    %55 = arith.truncf %54 : vector<32x16xf32> to vector<32x16xbf16>
    %c1_38 = arith.constant 1 : index
    %c0_39 = arith.constant 0 : index
    %56 = vector.load %arg16[%c1_38, %c0_39] : memref<34x16xbf16, #tpu.memory_space<vmem>>, vector<32x16xbf16>
    tpu.vector_store %arg16[%c1_38, %c0_39], %55 {strides = array<i32>} : memref<34x16xbf16, #tpu.memory_space<vmem>>, vector<32x16xbf16>,
    %c0_40 = arith.constant 0 : index
    %c0_41 = arith.constant 0 : index
    %57 = vector.load %arg16[%c0_40, %c0_41] : memref<34x16xbf16, #tpu.memory_space<vmem>>, vector<32x16xbf16>
    %c1_42 = arith.constant 1 : index
    %c0_43 = arith.constant 0 : index
    %58 = vector.load %arg16[%c1_42, %c0_43] : memref<34x16xbf16, #tpu.memory_space<vmem>>, vector<32x16xbf16>
    %c2_44 = arith.constant 2 : index
    %c0_45 = arith.constant 0 : index
    %59 = vector.load %arg16[%c2_44, %c0_45] : memref<34x16xbf16, #tpu.memory_space<vmem>>, vector<32x16xbf16>
    %60 = tpu.concatenate %57, %58, %59 in 1 : vector<32x16xbf16>, vector<32x16xbf16>, vector<32x16xbf16> -> vector<32x48xbf16>
    %c0_46 = arith.constant 0 : index
    %c0_47 = arith.constant 0 : index
    %61 = vector.load %arg2[%c0_46, %c0_47] : memref<16x32xbf16, #tpu.memory_space<vmem>>, vector<16x32xbf16>
    %cst_48 = arith.constant dense<0.000000e+00> : vector<16x48xf32>
    %62 = tpu.matmul %61, %60, %cst_48 {dimension_numbers = #tpu.dot_dimension_numbers<[1], [0], [0], [1], [0, 0, 1, 1], [], []>} : vector<16x32xbf16>, vector<32x48xbf16>, vector<16x48xf32> -> vector<16x48xf32>
    %63 = arith.truncf %62 : vector<16x48xf32> to vector<16x48xbf16>
    %c0_49 = arith.constant 0 : index
    %c0_50 = arith.constant 0 : index
    %64 = vector.load %arg8[%c0_49, %c0_50] : memref<48x128xbf16, #tpu.memory_space<vmem>>, vector<48x128xbf16>
    %cst_51 = arith.constant dense<0.000000e+00> : vector<16x128xf32>
    %65 = tpu.matmul %63, %64, %cst_51 {dimension_numbers = #tpu.dot_dimension_numbers<[1], [0], [0], [1], [0, 0, 1, 1], [], []>} : vector<16x48xbf16>, vector<48x128xbf16>, vector<16x128xf32> -> vector<16x128xf32>
    %c0_52 = arith.constant 0 : index
    %c0_53 = arith.constant 0 : index
    %66 = vector.load %arg9[%c0_52, %c0_53] : memref<1x128xf32, #tpu.memory_space<vmem>>, vector<1x128xf32>
    %67 = vector.broadcast %66 : vector<1x128xf32> to vector<16x128xf32>
    %68 = arith.addf %65, %67 : vector<16x128xf32>
    %69 = arith.negf %68 : vector<16x128xf32>
    %70 = math.exp %69 : vector<16x128xf32>
    %cst_54 = arith.constant 1.000000e+00 : f32
    %71 = vector.broadcast %cst_54 : f32 to vector<16x128xf32>
    %72 = arith.addf %71, %70 : vector<16x128xf32>
    %73 = arith.divf %71, %72 : vector<16x128xf32>
    %74 = arith.mulf %68, %73 : vector<16x128xf32>
    %75 = arith.truncf %74 : vector<16x128xf32> to vector<16x128xbf16>
    %c1_55 = arith.constant 1 : index
    %c0_56 = arith.constant 0 : index
    %76 = vector.load %arg17[%c1_55, %c0_56] : memref<18x128xbf16, #tpu.memory_space<vmem>>, vector<16x128xbf16>
    tpu.vector_store %arg17[%c1_55, %c0_56], %75 {strides = array<i32>} : memref<18x128xbf16, #tpu.memory_space<vmem>>, vector<16x128xbf16>,
    %c0_57 = arith.constant 0 : index
    %c0_58 = arith.constant 0 : index
    %77 = vector.load %arg17[%c0_57, %c0_58] : memref<18x128xbf16, #tpu.memory_space<vmem>>, vector<16x128xbf16>
    %c1_59 = arith.constant 1 : index
    %c0_60 = arith.constant 0 : index
    %78 = vector.load %arg17[%c1_59, %c0_60] : memref<18x128xbf16, #tpu.memory_space<vmem>>, vector<16x128xbf16>
    %c2_61 = arith.constant 2 : index
    %c0_62 = arith.constant 0 : index
    %79 = vector.load %arg17[%c2_61, %c0_62] : memref<18x128xbf16, #tpu.memory_space<vmem>>, vector<16x128xbf16>
    %80 = tpu.concatenate %77, %78, %79 in 1 : vector<16x128xbf16>, vector<16x128xbf16>, vector<16x128xbf16> -> vector<16x384xbf16>
    %c0_63 = arith.constant 0 : index
    %c0_64 = arith.constant 0 : index
    %81 = vector.load %arg10[%c0_63, %c0_64] : memref<384x128xbf16, #tpu.memory_space<vmem>>, vector<384x128xbf16>
    %cst_65 = arith.constant dense<0.000000e+00> : vector<16x128xf32>
    %82 = tpu.matmul %80, %81, %cst_65 {dimension_numbers = #tpu.dot_dimension_numbers<[1], [0], [0], [1], [0, 0, 1, 1], [], []>} : vector<16x384xbf16>, vector<384x128xbf16>, vector<16x128xf32> -> vector<16x128xf32>
    %c0_66 = arith.constant 0 : index
    %c0_67 = arith.constant 0 : index
    %83 = vector.load %arg11[%c0_66, %c0_67] : memref<1x128xf32, #tpu.memory_space<vmem>>, vector<1x128xf32>
    %84 = vector.broadcast %83 : vector<1x128xf32> to vector<16x128xf32>
    %85 = arith.addf %82, %84 : vector<16x128xf32>
    %86 = arith.negf %85 : vector<16x128xf32>
    %87 = math.exp %86 : vector<16x128xf32>
    %cst_68 = arith.constant 1.000000e+00 : f32
    %88 = vector.broadcast %cst_68 : f32 to vector<16x128xf32>
    %89 = arith.addf %88, %87 : vector<16x128xf32>
    %90 = arith.divf %88, %89 : vector<16x128xf32>
    %91 = arith.mulf %85, %90 : vector<16x128xf32>
    %92 = arith.truncf %91 : vector<16x128xf32> to vector<16x128xbf16>
    %c1_69 = arith.constant 1 : index
    %c0_70 = arith.constant 0 : index
    %93 = vector.load %arg18[%c1_69, %c0_70] : memref<18x128xbf16, #tpu.memory_space<vmem>>, vector<16x128xbf16>
    tpu.vector_store %arg18[%c1_69, %c0_70], %92 {strides = array<i32>} : memref<18x128xbf16, #tpu.memory_space<vmem>>, vector<16x128xbf16>,
    %c0_71 = arith.constant 0 : index
    %c0_72 = arith.constant 0 : index
    %94 = vector.load %arg18[%c0_71, %c0_72] : memref<18x128xbf16, #tpu.memory_space<vmem>>, vector<16x128xbf16>
    %c1_73 = arith.constant 1 : index
    %c0_74 = arith.constant 0 : index
    %95 = vector.load %arg18[%c1_73, %c0_74] : memref<18x128xbf16, #tpu.memory_space<vmem>>, vector<16x128xbf16>
    %c2_75 = arith.constant 2 : index
    %c0_76 = arith.constant 0 : index
    %96 = vector.load %arg18[%c2_75, %c0_76] : memref<18x128xbf16, #tpu.memory_space<vmem>>, vector<16x128xbf16>
    %97 = tpu.concatenate %94, %95, %96 in 1 : vector<16x128xbf16>, vector<16x128xbf16>, vector<16x128xbf16> -> vector<16x384xbf16>
    %c0_77 = arith.constant 0 : index
    %c0_78 = arith.constant 0 : index
    %98 = vector.load %arg3[%c0_77, %c0_78] : memref<8x16xbf16, #tpu.memory_space<vmem>>, vector<8x16xbf16>
    %cst_79 = arith.constant dense<0.000000e+00> : vector<8x384xf32>
    %99 = tpu.matmul %98, %97, %cst_79 {dimension_numbers = #tpu.dot_dimension_numbers<[1], [0], [0], [1], [0, 0, 1, 1], [], []>} : vector<8x16xbf16>, vector<16x384xbf16>, vector<8x384xf32> -> vector<8x384xf32>
    %100 = arith.truncf %99 : vector<8x384xf32> to vector<8x384xbf16>
    %c0_80 = arith.constant 0 : index
    %c0_81 = arith.constant 0 : index
    %101 = vector.load %arg12[%c0_80, %c0_81] : memref<384x256xbf16, #tpu.memory_space<vmem>>, vector<384x256xbf16>
    %cst_82 = arith.constant dense<0.000000e+00> : vector<8x256xf32>
    %102 = tpu.matmul %100, %101, %cst_82 {dimension_numbers = #tpu.dot_dimension_numbers<[1], [0], [0], [1], [0, 0, 1, 1], [], []>} : vector<8x384xbf16>, vector<384x256xbf16>, vector<8x256xf32> -> vector<8x256xf32>
    %c0_83 = arith.constant 0 : index
    %c0_84 = arith.constant 0 : index
    %103 = vector.load %arg13[%c0_83, %c0_84] : memref<1x256xf32, #tpu.memory_space<vmem>>, vector<1x256xf32>
    %104 = vector.broadcast %103 : vector<1x256xf32> to vector<8x256xf32>
    %105 = arith.addf %102, %104 : vector<8x256xf32>
    %c0_85 = arith.constant 0 : index
    %c0_86 = arith.constant 0 : index
    %c0_87 = arith.constant 0 : index
    %106 = vector.load %arg14[%c0_85, %c0_86, %c0_87] : memref<1x8x256xf32, #tpu.memory_space<vmem>>, vector<1x8x256xf32>
    %107 = vector.shape_cast %106 : vector<1x8x256xf32> to vector<8x256xf32>
    %108 = vector.shape_cast %105 : vector<8x256xf32> to vector<1x8x256xf32>
    tpu.vector_store %arg14[%c0_85, %c0_86, %c0_87], %108 {strides = array<i32>} : memref<1x8x256xf32, #tpu.memory_space<vmem>>, vector<1x8x256xf32>,
    return
  }
  func.func @transform_0(%arg0: i32) -> (i32, i32, i32) {
    %c0_i32 = arith.constant 0 : i32
    %c0_i32_0 = arith.constant 0 : i32
    %c0_i32_1 = arith.constant 0 : i32
    return %arg0, %c0_i32, %c0_i32_0 : i32, i32, i32
  }
  func.func @transform_1(%arg0: i32) -> (i32, i32) {
    %c0_i32 = arith.constant 0 : i32
    %c0_i32_0 = arith.constant 0 : i32
    %c0_i32_1 = arith.constant 0 : i32
    return %c0_i32, %c0_i32_0 : i32, i32
  }
  func.func @transform_2(%arg0: i32) -> (i32, i32) {
    %c0_i32 = arith.constant 0 : i32
    %c0_i32_0 = arith.constant 0 : i32
    %c0_i32_1 = arith.constant 0 : i32
    return %c0_i32, %c0_i32_0 : i32, i32
  }
  func.func @transform_3(%arg0: i32) -> (i32, i32) {
    %c0_i32 = arith.constant 0 : i32
    %c0_i32_0 = arith.constant 0 : i32
    %c0_i32_1 = arith.constant 0 : i32
    return %c0_i32, %c0_i32_0 : i32, i32
  }
  func.func @transform_4(%arg0: i32) -> (i32, i32) {
    %c0_i32 = arith.constant 0 : i32
    %c0_i32_0 = arith.constant 0 : i32
    %c0_i32_1 = arith.constant 0 : i32
    return %c0_i32, %c0_i32_0 : i32, i32
  }
  func.func @transform_5(%arg0: i32) -> (i32, i32) {
    %c0_i32 = arith.constant 0 : i32
    %c0_i32_0 = arith.constant 0 : i32
    %c0_i32_1 = arith.constant 0 : i32
    return %c0_i32, %c0_i32_0 : i32, i32
  }
  func.func @transform_6(%arg0: i32) -> (i32, i32) {
    %c0_i32 = arith.constant 0 : i32
    %c0_i32_0 = arith.constant 0 : i32
    %c0_i32_1 = arith.constant 0 : i32
    return %c0_i32, %c0_i32_0 : i32, i32
  }
  func.func @transform_7(%arg0: i32) -> (i32, i32) {
    %c0_i32 = arith.constant 0 : i32
    %c0_i32_0 = arith.constant 0 : i32
    %c0_i32_1 = arith.constant 0 : i32
    return %c0_i32, %c0_i32_0 : i32, i32
  }
  func.func @transform_8(%arg0: i32) -> (i32, i32) {
    %c0_i32 = arith.constant 0 : i32
    %c0_i32_0 = arith.constant 0 : i32
    %c0_i32_1 = arith.constant 0 : i32
    return %c0_i32, %c0_i32_0 : i32, i32
  }
  func.func @transform_9(%arg0: i32) -> (i32, i32) {
    %c0_i32 = arith.constant 0 : i32
    %c0_i32_0 = arith.constant 0 : i32
    %c0_i32_1 = arith.constant 0 : i32
    return %c0_i32, %c0_i32_0 : i32, i32
  }
  func.func @transform_10(%arg0: i32) -> (i32, i32) {
    %c0_i32 = arith.constant 0 : i32
    %c0_i32_0 = arith.constant 0 : i32
    %c0_i32_1 = arith.constant 0 : i32
    return %c0_i32, %c0_i32_0 : i32, i32
  }
  func.func @transform_11(%arg0: i32) -> (i32, i32) {
    %c0_i32 = arith.constant 0 : i32
    %c0_i32_0 = arith.constant 0 : i32
    %c0_i32_1 = arith.constant 0 : i32
    return %c0_i32, %c0_i32_0 : i32, i32
  }
  func.func @transform_12(%arg0: i32) -> (i32, i32) {
    %c0_i32 = arith.constant 0 : i32
    %c0_i32_0 = arith.constant 0 : i32
    %c0_i32_1 = arith.constant 0 : i32
    return %c0_i32, %c0_i32_0 : i32, i32
  }
  func.func @transform_13(%arg0: i32) -> (i32, i32, i32) {
    %c0_i32 = arith.constant 0 : i32
    %c0_i32_0 = arith.constant 0 : i32
    %c0_i32_1 = arith.constant 0 : i32
    return %arg0, %c0_i32, %c0_i32_0 : i32, i32, i32
  }
}

</mosaic_0001>

<llo_original>
// kernel: dynamics_extractor_forward.1
$region0: #{dynamics_extractor_forward.1}
  #allocation0 [shape = 'u32[]', space=smem, size = 0x4, offset = 0x4, fixed_abs, tag = 'smem constant byte address 0x4 - core index']
  #allocation1 [shape = 'u32[144,128]{1,0:T(1,128)}', space=vmem, size = 0x12000, scoped, tag = 'internal scratch']
  #allocation2 [shape = 'bf16[34,16]{1,0:T(8,128)(2,1)}', space=vmem, size = 0x2800, scoped, tag = 'scratch operand']
  #allocation3 [shape = 'bf16[34,16]{1,0:T(8,128)(2,1)}', space=vmem, size = 0x2800, scoped, tag = 'scratch operand']
  #allocation4 [shape = 'bf16[18,128]{1,0:T(8,128)(2,1)}', space=vmem, size = 0x1800, scoped, tag = 'scratch operand']
  #allocation5 [shape = 'bf16[18,128]{1,0:T(8,128)(2,1)}', space=vmem, size = 0x1800, scoped, tag = 'scratch operand']
  %s0 = inlined_call_operand.vmem [shape: f32[2,32,3], index: 0, kind: input, shape index: {}]
  %s1 = inlined_call_operand.vmem [shape: bf16[16,32], index: 1, kind: input, shape index: {}]
  %s2 = inlined_call_operand.vmem [shape: bf16[8,16], index: 2, kind: input, shape index: {}]
  %s3 = inlined_call_operand.vmem [shape: f32[3,16], index: 3, kind: input, shape index: {}]
  %s4 = inlined_call_operand.vmem [shape: f32[1,16], index: 4, kind: input, shape index: {}]
  %s5 = inlined_call_operand.vmem [shape: bf16[48,16], index: 5, kind: input, shape index: {}]
  %s6 = inlined_call_operand.hbm [shape: f32[1,16], index: 6, kind: input, shape index: {}]
  %s7 = inlined_call_operand.vmem [shape: bf16[48,128], index: 7, kind: input, shape index: {}]
  %s8 = inlined_call_operand.hbm [shape: f32[1,128], index: 8, kind: input, shape index: {}]
  %s9 = inlined_call_operand.hbm [shape: bf16[384,128], index: 9, kind: input, shape index: {}]
  %s10 = inlined_call_operand.hbm [shape: f32[1,128], index: 10, kind: input, shape index: {}]
  %s11 = inlined_call_operand.vmem [shape: bf16[384,256], index: 11, kind: input, shape index: {}]
  %s12 = inlined_call_operand.hbm [shape: f32[1,256], index: 12, kind: input, shape index: {}]
  %s13 = inlined_call_operand.vmem [shape: f32[2,8,256], index: 13, kind: output, shape index: {}]
  %s14 = sld [smem:[#allocation0]]
  $region105: #{dynamics_extractor_forward.1} parent=0
    _
  %s16 = ssub.s32 1, %s14
  %s17 = scalar_select 0, %s16, %s14
  $region1: #{dynamics_extractor_forward.1} parent=0
    #allocation6 [shape = 'u8[512]{0}', space=vmem, size = 0x400, scoped, tag = 'input window, operand 6, single buffered']
    #allocation7 [shape = 's32[2]{0}', space=sflag, size = 0x8, scoped, tag = 'scoped memory for dynamics_extractor_forward.1']
    #allocation8 [shape = 'u8[512]{0}', space=vmem, size = 0x400, scoped, tag = 'input window, operand 8, single buffered']
    #allocation9 [shape = 's32[1]{0}', space=sflag, size = 0x4, scoped, tag = 'scoped memory for dynamics_extractor_forward.1']
    #allocation10 [shape = 'u8[98304]{0}', space=vmem, size = 0x18000, scoped, tag = 'input window, operand 9, single buffered']
    #allocation11 [shape = 'u8[512]{0}', space=vmem, size = 0x400, scoped, tag = 'input window, operand 10, single buffered']
    #allocation12 [shape = 's32[1]{0}', space=sflag, size = 0x4, scoped, tag = 'scoped memory for dynamics_extractor_forward.1']
    #allocation13 [shape = 'u8[1024]{0}', space=vmem, size = 0x400, scoped, tag = 'input window, operand 12, single buffered']
    %18 = vsyncpa [#allocation7], 0
    %19 = vsyncpa [#allocation9], 0
    %20 = vsyncpa [#allocation12], 0
    loop: start=0, step=1, limit=4
    $region2: #{dynamics_extractor_forward.1} parent=1 // loop_pre_header
      _
    $region3: #{dynamics_extractor_forward.1} parent=1 // loop_header
      %s22 = sphi 0, %s26
      %p23 = scmp.ge.s32.totalorder %s22, 4
      %s32 = sphi 0, %s34
      %s35 = sphi 0, %s32
      %s36 = sphi 0, %s35
      %s52 = sphi 0, %s36
      %s56 = sphi 0, %s56
      %s58 = sphi 0, %s56
      %s59 = sphi 0, %s58
      %s73 = sphi 0, %s59
      %s77 = sphi 0, %s77
      %s79 = sphi 0, %s77
      %s80 = sphi 0, %s79
      %s94 = sphi 0, %s80
      %s98 = sphi 0, %s98
      %s100 = sphi 0, %s98
      %s101 = sphi 0, %s100
      %s115 = sphi 0, %s101
      %s119 = sphi 0, %s119
      %s121 = sphi 0, %s119
      %s122 = sphi 0, %s121
      %s136 = sphi 0, %s122
      %s140 = sphi 0, %s140
      %s142 = sphi 0, %s140
      %s143 = sphi 0, %s142
      %s157 = sphi 0, %s143
      %s161 = sphi 0, %s161
      %s163 = sphi 0, %s161
      %s164 = sphi 0, %s163
      %s178 = sphi 0, %s164
      %s182 = sphi 0, %s182
      %s184 = sphi 0, %s182
      %s185 = sphi 0, %s184
      %s199 = sphi 0, %s185
      %s203 = sphi 0, %s203
      %s205 = sphi 0, %s203
      %s206 = sphi 0, %s205
      %s220 = sphi 0, %s206
      %s224 = sphi 0, %s224
      %s226 = sphi 0, %s224
      %s227 = sphi 0, %s226
      %s241 = sphi 0, %s227
      %s245 = sphi 0, %s245
      %s247 = sphi 0, %s245
      %s248 = sphi 0, %s247
      %s262 = sphi 0, %s248
      %s266 = sphi 0, %s266
      %s268 = sphi 0, %s266
      %s269 = sphi 0, %s268
      %s283 = sphi 0, %s269
      %s287 = sphi 0, %s287
      %s289 = sphi 0, %s287
      %s290 = sphi 0, %s289
      %s304 = sphi 0, %s290
      %s310 = sphi 0, %s312
      %s313 = sphi 0, %s310
      %s314 = sphi 0, %s313
      %s330 = sphi 0, %s314
    $region4: #{dynamics_extractor_forward.1} parent=1 // loop_header_branch
      %25 = sbr.rel (%p23) target = $region8
    $region5: #{dynamics_extractor_forward.1} parent=1 // loop_body
      %s27 = ssub.s32 %s22, 1
      %s28 = ssub.s32 %s22, 2
      %s29 = sadd.s32 %s22, 1
      %s30 = ssub.s32 %s22, %s29
      %p31 = scmp.eq.s32.totalorder %s30, 0
      %s33 = sadd.s32 %s32, 1
      %s34 = scalar_select %p31, %s32, %s33
      %p37 = pneg %p31
      %p38 = scmp.eq.s32.totalorder %s22, 1
      %p39 = por %p37, %p38
      %p40 = scmp.ne.s32.totalorder %s32, %s35
      %p41 = scmp.eq.s32.totalorder %s22, 0
      %p42 = por %p40, %p41
      %p43 = scmp.ne.s32.totalorder %s32, %s35
      %p44 = scmp.eq.s32.totalorder %s27, 1
      %p45 = por %p43, %p44
      %p46 = scmp.ne.s32.totalorder %s35, %s36
      %p47 = scmp.eq.s32.totalorder %s27, 0
      %p48 = por %p46, %p47
      %p49 = scmp.ne.s32.totalorder %s35, %s36
      %p50 = scmp.eq.s32.totalorder %s28, 1
      %p51 = por %p49, %p50
      %p53 = scmp.ne.s32.totalorder %s36, %s52
      %p54 = scmp.eq.s32.totalorder %s28, 0
      %p55 = por %p53, %p54
      %s57 = sadd.s32 %s56, 1
      %p60 = scmp.eq.s32.totalorder %s22, 1
      %p61 = scmp.ne.s32.totalorder %s56, %s58
      %p62 = scmp.eq.s32.totalorder %s22, 0
      %p63 = por %p61, %p62
      %p64 = scmp.ne.s32.totalorder %s56, %s58
      %p65 = scmp.eq.s32.totalorder %s27, 1
      %p66 = por %p64, %p65
      %p67 = scmp.ne.s32.totalorder %s58, %s59
      %p68 = scmp.eq.s32.totalorder %s27, 0
      %p69 = por %p67, %p68
      %p70 = scmp.ne.s32.totalorder %s58, %s59
      %p71 = scmp.eq.s32.totalorder %s28, 1
      %p72 = por %p70, %p71
      %p74 = scmp.ne.s32.totalorder %s59, %s73
      %p75 = scmp.eq.s32.totalorder %s28, 0
      %p76 = por %p74, %p75
      %s78 = sadd.s32 %s77, 1
      %p81 = scmp.eq.s32.totalorder %s22, 1
      %p82 = scmp.ne.s32.totalorder %s77, %s79
      %p83 = scmp.eq.s32.totalorder %s22, 0
      %p84 = por %p82, %p83
      %p85 = scmp.ne.s32.totalorder %s77, %s79
      %p86 = scmp.eq.s32.totalorder %s27, 1
      %p87 = por %p85, %p86
      %p88 = scmp.ne.s32.totalorder %s79, %s80
      %p89 = scmp.eq.s32.totalorder %s27, 0
      %p90 = por %p88, %p89
      %p91 = scmp.ne.s32.totalorder %s79, %s80
      %p92 = scmp.eq.s32.totalorder %s28, 1
      %p93 = por %p91, %p92
      %p95 = scmp.ne.s32.totalorder %s80, %s94
      %p96 = scmp.eq.s32.totalorder %s28, 0
      %p97 = por %p95, %p96
      %s99 = sadd.s32 %s98, 1
      %p102 = scmp.eq.s32.totalorder %s22, 1
      %p103 = scmp.ne.s32.totalorder %s98, %s100
      %p104 = scmp.eq.s32.totalorder %s22, 0
      %p105 = por %p103, %p104
      %p106 = scmp.ne.s32.totalorder %s98, %s100
      %p107 = scmp.eq.s32.totalorder %s27, 1
      %p108 = por %p106, %p107
      %p109 = scmp.ne.s32.totalorder %s100, %s101
      %p110 = scmp.eq.s32.totalorder %s27, 0
      %p111 = por %p109, %p110
      %p112 = scmp.ne.s32.totalorder %s100, %s101
      %p113 = scmp.eq.s32.totalorder %s28, 1
      %p114 = por %p112, %p113
      %p116 = scmp.ne.s32.totalorder %s101, %s115
      %p117 = scmp.eq.s32.totalorder %s28, 0
      %p118 = por %p116, %p117
      %s120 = sadd.s32 %s119, 1
      %p123 = scmp.eq.s32.totalorder %s22, 1
      %p124 = scmp.ne.s32.totalorder %s119, %s121
      %p125 = scmp.eq.s32.totalorder %s22, 0
      %p126 = por %p124, %p125
      %p127 = scmp.ne.s32.totalorder %s119, %s121
      %p128 = scmp.eq.s32.totalorder %s27, 1
      %p129 = por %p127, %p128
      %p130 = scmp.ne.s32.totalorder %s121, %s122
      %p131 = scmp.eq.s32.totalorder %s27, 0
      %p132 = por %p130, %p131
      %p133 = scmp.ne.s32.totalorder %s121, %s122
      %p134 = scmp.eq.s32.totalorder %s28, 1
      %p135 = por %p133, %p134
      %p137 = scmp.ne.s32.totalorder %s122, %s136
      %p138 = scmp.eq.s32.totalorder %s28, 0
      %p139 = por %p137, %p138
      %s141 = sadd.s32 %s140, 1
      %p144 = scmp.eq.s32.totalorder %s22, 1
      %p145 = scmp.ne.s32.totalorder %s140, %s142
      %p146 = scmp.eq.s32.totalorder %s22, 0
      %p147 = por %p145, %p146
      %p148 = scmp.ne.s32.totalorder %s140, %s142
      %p149 = scmp.eq.s32.totalorder %s27, 1
      %p150 = por %p148, %p149
      %p151 = scmp.ne.s32.totalorder %s142, %s143
      %p152 = scmp.eq.s32.totalorder %s27, 0
      %p153 = por %p151, %p152
      %p154 = scmp.ne.s32.totalorder %s142, %s143
      %p155 = scmp.eq.s32.totalorder %s28, 1
      %p156 = por %p154, %p155
      %p158 = scmp.ne.s32.totalorder %s143, %s157
      %p159 = scmp.eq.s32.totalorder %s28, 0
      %p160 = por %p158, %p159
      %s162 = sadd.s32 %s161, 1
      %p165 = scmp.eq.s32.totalorder %s22, 1
      %p166 = scmp.ne.s32.totalorder %s161, %s163
      %p167 = scmp.eq.s32.totalorder %s22, 0
      %p168 = por %p166, %p167
      %p169 = scmp.ne.s32.totalorder %s161, %s163
      %p170 = scmp.eq.s32.totalorder %s27, 1
      %p171 = por %p169, %p170
      %p172 = scmp.ne.s32.totalorder %s163, %s164
      %p173 = scmp.eq.s32.totalorder %s27, 0
      %p174 = por %p172, %p173
      %p175 = scmp.ne.s32.totalorder %s163, %s164
      %p176 = scmp.eq.s32.totalorder %s28, 1
      %p177 = por %p175, %p176
      %p179 = scmp.ne.s32.totalorder %s164, %s178
      %p180 = scmp.eq.s32.totalorder %s28, 0
      %p181 = por %p179, %p180
      %s183 = sadd.s32 %s182, 1
      %p186 = scmp.eq.s32.totalorder %s22, 1
      %p187 = scmp.ne.s32.totalorder %s182, %s184
      %p188 = scmp.eq.s32.totalorder %s22, 0
      %p189 = por %p187, %p188
      %p190 = scmp.ne.s32.totalorder %s182, %s184
      %p191 = scmp.eq.s32.totalorder %s27, 1
      %p192 = por %p190, %p191
      %p193 = scmp.ne.s32.totalorder %s184, %s185
      %p194 = scmp.eq.s32.totalorder %s27, 0
      %p195 = por %p193, %p194
      %p196 = scmp.ne.s32.totalorder %s184, %s185
      %p197 = scmp.eq.s32.totalorder %s28, 1
      %p198 = por %p196, %p197
      %p200 = scmp.ne.s32.totalorder %s185, %s199
      %p201 = scmp.eq.s32.totalorder %s28, 0
      %p202 = por %p200, %p201
      %s204 = sadd.s32 %s203, 1
      %p207 = scmp.eq.s32.totalorder %s22, 1
      %p208 = scmp.ne.s32.totalorder %s203, %s205
      %p209 = scmp.eq.s32.totalorder %s22, 0
      %p210 = por %p208, %p209
      %p211 = scmp.ne.s32.totalorder %s203, %s205
      %p212 = scmp.eq.s32.totalorder %s27, 1
      %p213 = por %p211, %p212
      %p214 = scmp.ne.s32.totalorder %s205, %s206
      %p215 = scmp.eq.s32.totalorder %s27, 0
      %p216 = por %p214, %p215
      %p217 = scmp.ne.s32.totalorder %s205, %s206
      %p218 = scmp.eq.s32.totalorder %s28, 1
      %p219 = por %p217, %p218
      %p221 = scmp.ne.s32.totalorder %s206, %s220
      %p222 = scmp.eq.s32.totalorder %s28, 0
      %p223 = por %p221, %p222
      %s225 = sadd.s32 %s224, 1
      %p228 = scmp.eq.s32.totalorder %s22, 1
      %p229 = scmp.ne.s32.totalorder %s224, %s226
      %p230 = scmp.eq.s32.totalorder %s22, 0
      %p231 = por %p229, %p230
      %p232 = scmp.ne.s32.totalorder %s224, %s226
      %p233 = scmp.eq.s32.totalorder %s27, 1
      %p234 = por %p232, %p233
      %p235 = scmp.ne.s32.totalorder %s226, %s227
      %p236 = scmp.eq.s32.totalorder %s27, 0
      %p237 = por %p235, %p236
      %p238 = scmp.ne.s32.totalorder %s226, %s227
      %p239 = scmp.eq.s32.totalorder %s28, 1
      %p240 = por %p238, %p239
      %p242 = scmp.ne.s32.totalorder %s227, %s241
      %p243 = scmp.eq.s32.totalorder %s28, 0
      %p244 = por %p242, %p243
      %s246 = sadd.s32 %s245, 1
      %p249 = scmp.eq.s32.totalorder %s22, 1
      %p250 = scmp.ne.s32.totalorder %s245, %s247
      %p251 = scmp.eq.s32.totalorder %s22, 0
      %p252 = por %p250, %p251
      %p253 = scmp.ne.s32.totalorder %s245, %s247
      %p254 = scmp.eq.s32.totalorder %s27, 1
      %p255 = por %p253, %p254
      %p256 = scmp.ne.s32.totalorder %s247, %s248
      %p257 = scmp.eq.s32.totalorder %s27, 0
      %p258 = por %p256, %p257
      %p259 = scmp.ne.s32.totalorder %s247, %s248
      %p260 = scmp.eq.s32.totalorder %s28, 1
      %p261 = por %p259, %p260
      %p263 = scmp.ne.s32.totalorder %s248, %s262
      %p264 = scmp.eq.s32.totalorder %s28, 0
      %p265 = por %p263, %p264
      %s267 = sadd.s32 %s266, 1
      %p270 = scmp.eq.s32.totalorder %s22, 1
      %p271 = scmp.ne.s32.totalorder %s266, %s268
      %p272 = scmp.eq.s32.totalorder %s22, 0
      %p273 = por %p271, %p272
      %p274 = scmp.ne.s32.totalorder %s266, %s268
      %p275 = scmp.eq.s32.totalorder %s27, 1
      %p276 = por %p274, %p275
      %p277 = scmp.ne.s32.totalorder %s268, %s269
      %p278 = scmp.eq.s32.totalorder %s27, 0
      %p279 = por %p277, %p278
      %p280 = scmp.ne.s32.totalorder %s268, %s269
      %p281 = scmp.eq.s32.totalorder %s28, 1
      %p282 = por %p280, %p281
      %p284 = scmp.ne.s32.totalorder %s269, %s283
      %p285 = scmp.eq.s32.totalorder %s28, 0
      %p286 = por %p284, %p285
      %s288 = sadd.s32 %s287, 1
      %p291 = scmp.eq.s32.totalorder %s22, 1
      %p292 = scmp.ne.s32.totalorder %s287, %s289
      %p293 = scmp.eq.s32.totalorder %s22, 0
      %p294 = por %p292, %p293
      %p295 = scmp.ne.s32.totalorder %s287, %s289
      %p296 = scmp.eq.s32.totalorder %s27, 1
      %p297 = por %p295, %p296
      %p298 = scmp.ne.s32.totalorder %s289, %s290
      %p299 = scmp.eq.s32.totalorder %s27, 0
      %p300 = por %p298, %p299
      %p301 = scmp.ne.s32.totalorder %s289, %s290
      %p302 = scmp.eq.s32.totalorder %s28, 1
      %p303 = por %p301, %p302
      %p305 = scmp.ne.s32.totalorder %s290, %s304
      %p306 = scmp.eq.s32.totalorder %s28, 0
      %p307 = por %p305, %p306
      %s308 = ssub.s32 %s22, %s29
      %p309 = scmp.eq.s32.totalorder %s308, 0
      %s311 = sadd.s32 %s310, 1
      %s312 = scalar_select %p309, %s310, %s311
      %p315 = pneg %p309
      %p316 = scmp.eq.s32.totalorder %s22, 1
      %p317 = por %p315, %p316
      %p318 = scmp.ne.s32.totalorder %s310, %s313
      %p319 = scmp.eq.s32.totalorder %s22, 0
      %p320 = por %p318, %p319
      %p321 = scmp.ne.s32.totalorder %s310, %s313
      %p322 = scmp.eq.s32.totalorder %s27, 1
      %p323 = por %p321, %p322
      %p324 = scmp.ne.s32.totalorder %s313, %s314
      %p325 = scmp.eq.s32.totalorder %s27, 0
      %p326 = por %p324, %p325
      %p327 = scmp.ne.s32.totalorder %s313, %s314
      %p328 = scmp.eq.s32.totalorder %s28, 1
      %p329 = por %p327, %p328
      %p331 = scmp.ne.s32.totalorder %s314, %s330
      %p332 = scmp.eq.s32.totalorder %s28, 0
      %p333 = por %p331, %p332
      %p334 = scmp.le.s32.totalorder 1, %s22
      %p335 = scmp.lt.s32.totalorder %s22, 3
      %p336 = pnand %p334, %p335
      %p337 = pneg %p336
      // Predicated region
      $region9: #{dynamics_extractor_forward.1} parent=5 // pred_check
        _
      $region10: #{dynamics_extractor_forward.1} parent=5 // pred_check_branch
        %339 = sbr.rel (%p336) target = $region12
      $region11: #{dynamics_extractor_forward.1} parent=5 // pred_region
        %s340 = ssub.s32 %s22, 1
        // Predicated region
        $region13: #{dynamics_extractor_forward.1} parent=11 // pred_check
          %p341 = pneg %p69
        $region14: #{dynamics_extractor_forward.1} parent=11 // pred_check_branch
          %343 = sbr.rel (%p341) target = $region16
        $region15: #{dynamics_extractor_forward.1} parent=11 // pred_region
          _
        $region16: #{dynamics_extractor_forward.1} parent=11 // pred_fallthru
          _
        // Predicated region
        $region17: #{dynamics_extractor_forward.1} parent=11 // pred_check
          %p344 = pneg %p90
        $region18: #{dynamics_extractor_forward.1} parent=11 // pred_check_branch
          %346 = sbr.rel (%p344) target = $region20
        $region19: #{dynamics_extractor_forward.1} parent=11 // pred_region
          _
        $region20: #{dynamics_extractor_forward.1} parent=11 // pred_fallthru
          _
        // Predicated region
        $region21: #{dynamics_extractor_forward.1} parent=11 // pred_check
          %p347 = pneg %p111
        $region22: #{dynamics_extractor_forward.1} parent=11 // pred_check_branch
          %349 = sbr.rel (%p347) target = $region24
        $region23: #{dynamics_extractor_forward.1} parent=11 // pred_region
          _
        $region24: #{dynamics_extractor_forward.1} parent=11 // pred_fallthru
          _
        // Predicated region
        $region25: #{dynamics_extractor_forward.1} parent=11 // pred_check
          %p350 = pneg %p132
        $region26: #{dynamics_extractor_forward.1} parent=11 // pred_check_branch
          %352 = sbr.rel (%p350) target = $region28
        $region27: #{dynamics_extractor_forward.1} parent=11 // pred_region
          _
        $region28: #{dynamics_extractor_forward.1} parent=11 // pred_fallthru
          _
        // Predicated region
        $region29: #{dynamics_extractor_forward.1} parent=11 // pred_check
          %p353 = pneg %p153
        $region30: #{dynamics_extractor_forward.1} parent=11 // pred_check_branch
          %355 = sbr.rel (%p353) target = $region32
        $region31: #{dynamics_extractor_forward.1} parent=11 // pred_region
          _
        $region32: #{dynamics_extractor_forward.1} parent=11 // pred_fallthru
          _
        // Predicated region
        $region33: #{dynamics_extractor_forward.1} parent=11 // pred_check
          %p356 = pneg %p174
        $region34: #{dynamics_extractor_forward.1} parent=11 // pred_check_branch
          %358 = sbr.rel (%p356) target = $region36
        $region35: #{dynamics_extractor_forward.1} parent=11 // pred_region
          %s360 = ssub.s32 16, 16
          %361 = vsyncadd [#allocation7], %s360
          %s363 = sshll.u32 [#allocation6], 4
          %s364 = int_to_ptr.vmem [resolvable:$true] %s363
          %366 = dma.hbm_to_vmem [thread:$0]  %s6, 16, %s364, [#allocation7]
        $region36: #{dynamics_extractor_forward.1} parent=11 // pred_fallthru
          _
        // Predicated region
        $region37: #{dynamics_extractor_forward.1} parent=11 // pred_check
          %p367 = pneg %p195
        $region38: #{dynamics_extractor_forward.1} parent=11 // pred_check_branch
          %369 = sbr.rel (%p367) target = $region40
        $region39: #{dynamics_extractor_forward.1} parent=11 // pred_region
          _
        $region40: #{dynamics_extractor_forward.1} parent=11 // pred_fallthru
          _
        // Predicated region
        $region41: #{dynamics_extractor_forward.1} parent=11 // pred_check
          %p370 = pneg %p216
        $region42: #{dynamics_extractor_forward.1} parent=11 // pred_check_branch
          %372 = sbr.rel (%p370) target = $region44
        $region43: #{dynamics_extractor_forward.1} parent=11 // pred_region
          %s374 = ssub.s32 16, 16
          %375 = vsyncadd [#allocation9], %s374
          %s377 = sshll.u32 [#allocation8], 4
          %s378 = int_to_ptr.vmem [resolvable:$true] %s377
          %380 = dma.hbm_to_vmem [thread:$0]  %s8, 16, %s378, [#allocation9]
        $region44: #{dynamics_extractor_forward.1} parent=11 // pred_fallthru
          _
        // Predicated region
        $region45: #{dynamics_extractor_forward.1} parent=11 // pred_check
          %p381 = pneg %p237
        $region46: #{dynamics_extractor_forward.1} parent=11 // pred_check_branch
          %383 = sbr.rel (%p381) target = $region48
        $region47: #{dynamics_extractor_forward.1} parent=11 // pred_region
          %s385 = ssub.s32 3072, 3072
          %386 = vsyncadd [#allocation9], %s385
          %s387 = sshll.u32 [#allocation10], 4
          %s388 = int_to_ptr.vmem [resolvable:$true] %s387
          %393 = dma.hbm_to_vmem [thread:$0]  %s9, 3072, %s388, [#allocation9], 64, 64, 4
        $region48: #{dynamics_extractor_forward.1} parent=11 // pred_fallthru
          _
        // Predicated region
        $region49: #{dynamics_extractor_forward.1} parent=11 // pred_check
          %p394 = pneg %p258
        $region50: #{dynamics_extractor_forward.1} parent=11 // pred_check_branch
          %396 = sbr.rel (%p394) target = $region52
        $region51: #{dynamics_extractor_forward.1} parent=11 // pred_region
          %s398 = ssub.s32 16, 16
          %399 = vsyncadd [#allocation12], %s398
          %s401 = sshll.u32 [#allocation11], 4
          %s402 = int_to_ptr.vmem [resolvable:$true] %s401
          %404 = dma.hbm_to_vmem [thread:$0]  %s10, 16, %s402, [#allocation12]
        $region52: #{dynamics_extractor_forward.1} parent=11 // pred_fallthru
          _
        // Predicated region
        $region53: #{dynamics_extractor_forward.1} parent=11 // pred_check
          %p405 = pneg %p279
        $region54: #{dynamics_extractor_forward.1} parent=11 // pred_check_branch
          %407 = sbr.rel (%p405) target = $region56
        $region55: #{dynamics_extractor_forward.1} parent=11 // pred_region
          _
        $region56: #{dynamics_extractor_forward.1} parent=11 // pred_fallthru
          _
        // Predicated region
        $region57: #{dynamics_extractor_forward.1} parent=11 // pred_check
          %p408 = pneg %p300
        $region58: #{dynamics_extractor_forward.1} parent=11 // pred_check_branch
          %410 = sbr.rel (%p408) target = $region60
        $region59: #{dynamics_extractor_forward.1} parent=11 // pred_region
          %s412 = ssub.s32 32, 32
          %413 = vsyncadd [#allocation12], %s412
          %s415 = sshll.u32 [#allocation13], 4
          %s416 = int_to_ptr.vmem [resolvable:$true] %s415
          %418 = dma.hbm_to_vmem [thread:$0]  %s12, 32, %s416, [#allocation12]
        $region60: #{dynamics_extractor_forward.1} parent=11 // pred_fallthru
          _
      $region12: #{dynamics_extractor_forward.1} parent=5 // pred_fallthru
        _
      %p419 = scmp.lt.s32.totalorder %s22, 2
      // Predicated region
      $region61: #{dynamics_extractor_forward.1} parent=5 // pred_check
        %p420 = pneg %p419
      $region62: #{dynamics_extractor_forward.1} parent=5 // pred_check_branch
        %422 = sbr.rel (%p420) target = $region64
      $region63: #{dynamics_extractor_forward.1} parent=5 // pred_region
        // Predicated region
        $region65: #{dynamics_extractor_forward.1} parent=63 // pred_check
          %p423 = pneg %p42
        $region66: #{dynamics_extractor_forward.1} parent=63 // pred_check_branch
          %425 = sbr.rel (%p423) target = $region68
        $region67: #{dynamics_extractor_forward.1} parent=63 // pred_region
          %p426 = scmp.lt.s32.totalorder %s22, 1
          %s427 = scalar_select %p426, %s22, 1
          %s428 = smul.addr %s427, 4
          %s429 = smul.addr %s428, 8
          %s430 = scalar_lea.vmem %s0, %s429
        $region68: #{dynamics_extractor_forward.1} parent=63 // pred_fallthru
          _
      $region64: #{dynamics_extractor_forward.1} parent=5 // pred_fallthru
        _
      %p431 = scmp.le.s32.totalorder 1, %s22
      %p432 = scmp.lt.s32.totalorder %s22, 3
      %p433 = pnand %p431, %p432
      %p434 = pneg %p433
      // Predicated region
      $region69: #{dynamics_extractor_forward.1} parent=5 // pred_check
        _
      $region70: #{dynamics_extractor_forward.1} parent=5 // pred_check_branch
        %436 = sbr.rel (%p433) target = $region72
      $region71: #{dynamics_extractor_forward.1} parent=5 // pred_region
        %s437 = ssub.s32 %s22, 1
        // Predicated region
        $region73: #{dynamics_extractor_forward.1} parent=71 // pred_check
          %p438 = pneg %p174
        $region74: #{dynamics_extractor_forward.1} parent=71 // pred_check_branch
          %440 = sbr.rel (%p438) target = $region76
        $region75: #{dynamics_extractor_forward.1} parent=71 // pred_region
          %441 = dma.done [#allocation7], 16
        $region76: #{dynamics_extractor_forward.1} parent=71 // pred_fallthru
          _
        // Predicated region
        $region77: #{dynamics_extractor_forward.1} parent=71 // pred_check
          %p442 = pneg %p216
        $region78: #{dynamics_extractor_forward.1} parent=71 // pred_check_branch
          %444 = sbr.rel (%p442) target = $region80
        $region79: #{dynamics_extractor_forward.1} parent=71 // pred_region
          %445 = dma.done [#allocation9], 16
        $region80: #{dynamics_extractor_forward.1} parent=71 // pred_fallthru
          _
        // Predicated region
        $region81: #{dynamics_extractor_forward.1} parent=71 // pred_check
          %p446 = pneg %p237
        $region82: #{dynamics_extractor_forward.1} parent=71 // pred_check_branch
          %448 = sbr.rel (%p446) target = $region84
        $region83: #{dynamics_extractor_forward.1} parent=71 // pred_region
          %449 = dma.done [#allocation9], 3072
        $region84: #{dynamics_extractor_forward.1} parent=71 // pred_fallthru
          _
        // Predicated region
        $region85: #{dynamics_extractor_forward.1} parent=71 // pred_check
          %p450 = pneg %p258
        $region86: #{dynamics_extractor_forward.1} parent=71 // pred_check_branch
          %452 = sbr.rel (%p450) target = $region88
        $region87: #{dynamics_extractor_forward.1} parent=71 // pred_region
          %453 = dma.done [#allocation12], 16
        $region88: #{dynamics_extractor_forward.1} parent=71 // pred_fallthru
          _
        // Predicated region
        $region89: #{dynamics_extractor_forward.1} parent=71 // pred_check
          %p454 = pneg %p300
        $region90: #{dynamics_extractor_forward.1} parent=71 // pred_check_branch
          %456 = sbr.rel (%p454) target = $region92
        $region91: #{dynamics_extractor_forward.1} parent=71 // pred_region
          %457 = dma.done [#allocation12], 32
        $region92: #{dynamics_extractor_forward.1} parent=71 // pred_fallthru
          _
        %p458 = scmp.lt.s32.totalorder %s27, 1
        %s459 = scalar_select %p458, %s27, 1
        %s460 = smul.addr %s459, 4
        %s461 = smul.addr %s460, 8
        %s462 = scalar_lea.vmem %s0, %s461
        %p463 = pneg %p48
        %p464 = pneg %p45
        %p465 = pneg %p69
        %p466 = pneg %p66
        %p467 = pneg %p90
        %p468 = pneg %p87
        %p469 = pneg %p111
        %p470 = pneg %p108
        %p471 = pneg %p132
        %p472 = pneg %p129
        %p473 = pneg %p153
        %p474 = pneg %p150
        %p475 = pneg %p174
        %p476 = pneg %p171
        %p477 = pneg %p195
        %p478 = pneg %p192
        %p479 = pneg %p216
        %p480 = pneg %p213
        %p481 = pneg %p237
        %p482 = pneg %p234
        %p483 = pneg %p258
        %p484 = pneg %p255
        %p485 = pneg %p279
        %p486 = pneg %p276
        %p487 = pneg %p300
        %p488 = pneg %p297
        %p489 = pneg %p326
        %p490 = pneg %p323
        %p491 = scmp.lt.s32.totalorder %s27, 1
        %s492 = scalar_select %p491, %s27, 1
        %s493 = smul.addr %s492, 2
        %s494 = smul.addr %s493, 8
        %s495 = scalar_lea.vmem %s13, %s494
        %p496 = scmp.lt.s32.totalorder %s27, 1
        %s497 = scalar_select %p496, %s27, 1
        %s498 = smul.addr %s497, 4
        %s499 = smul.addr %s498, 8
        %s500 = scalar_lea.vmem %s0, %s499
        %p501 = scmp.lt.s32.totalorder %s27, 1
        %s502 = scalar_select %p501, %s27, 1
        %s503 = smul.addr %s502, 2
        %s504 = smul.addr %s503, 8
        %s505 = scalar_lea.vmem %s13, %s504
        %vm507 = vcmask 122880
        %vm508 = vsmask.f32 256
        %vm509 = vmand %vm507, %vm508
        %v510 = vld [vmem:[#allocation2] sm:$0x1]
        %v511 = vsel %vm509, 0, %v510
        %512 = vst [vmem:[#allocation2] sm:$0x1] %v511
        %vm513 = vsmask.f32 7938
        %vm514 = vmand %vm507, %vm513
        %v515 = vld [vmem:[#allocation2 + $0x10] sm:$0x1]
        %v516 = vsel %vm514, 0, %v515
        %517 = vst [vmem:[#allocation2 + $0x10] sm:$0x1] %v516
        %v518 = vld [vmem:[#allocation3] sm:$0x1]
        %v519 = vsel %vm509, 0, %v518
        %520 = vst [vmem:[#allocation3] sm:$0x1] %v519
        %v521 = vld [vmem:[#allocation3 + $0x10] sm:$0x1]
        %v522 = vsel %vm514, 0, %v521
        %523 = vst [vmem:[#allocation3 + $0x10] sm:$0x1] %v522
        %vm524 = vcmask 1040384
        %vm525 = vmand %vm524, %vm508
        %v526 = vld [vmem:[#allocation4] sm:$0x1]
        %v527 = vsel %vm525, 0, %v526
        %528 = vst [vmem:[#allocation4] sm:$0x1] %v527
        %vm529 = vmand %vm524, %vm513
        %v530 = vld [vmem:[#allocation4 + $0x8] sm:$0x1]
        %v531 = vsel %vm529, 0, %v530
        %532 = vst [vmem:[#allocation4 + $0x8] sm:$0x1] %v531
        %v533 = vld [vmem:[#allocation5] sm:$0x1]
        %v534 = vsel %vm525, 0, %v533
        %535 = vst [vmem:[#allocation5] sm:$0x1] %v534
        %v536 = vld [vmem:[#allocation5 + $0x8] sm:$0x1]
        %v537 = vsel %vm529, 0, %v536
        %538 = vst [vmem:[#allocation5 + $0x8] sm:$0x1] %v537
        %v539 = vld [vmem:[%s500] sm:$0xff]
        %v540 = vld [vmem:[%s500 + $0x8] sm:$0xff]
        %v541 = vld [vmem:[%s500 + $0x10] sm:$0xff]
        %v542 = vld [vmem:[%s500 + $0x18] sm:$0xff]
        %v543 = vld [vmem:[%s3] sm:$0x1]
        %545 = vset.pattern.permute.xlu0 0
        %546 = vperm.xlu0 %545, %v539
        %v547 = vpop.permute.xlu0 %546
        %550 = vset.pattern.permute.xlu0 0
        %551 = vperm.xlu0 %550, %v540
        %v552 = vpop.permute.xlu0 %551
        %555 = vset.pattern.permute.xlu0 0
        %556 = vperm.xlu0 %555, %v541
        %v557 = vpop.permute.xlu0 %556
        %560 = vset.pattern.permute.xlu0 0
        %561 = vperm.xlu0 %560, %v542
        %v562 = vpop.permute.xlu0 %561
        %v564 = vlaneseq
        %v565 = vshrl.u32 %v564, 7
        %v566 = vsub.s32 0, %v565
        %v567 = vrot.slane %v543, %v566
        %v568 = vmul.f32 %v547, %v567
        %v569 = vmul.f32 %v552, %v567
        %v570 = vmul.f32 %v557, %v567
        %v571 = vmul.f32 %v562, %v567
        %v572 = vld [vmem:[%s3 + $0x1] sm:$0x1]
        %573 = vset.pattern.permute.xlu0 1
        %574 = vperm.xlu0 %573, %v539
        %v575 = vpop.permute.xlu0 %574
        %577 = vset.pattern.permute.xlu0 1
        %578 = vperm.xlu0 %577, %v540
        %v579 = vpop.permute.xlu0 %578
        %581 = vset.pattern.permute.xlu0 1
        %582 = vperm.xlu0 %581, %v541
        %v583 = vpop.permute.xlu0 %582
        %585 = vset.pattern.permute.xlu0 1
        %586 = vperm.xlu0 %585, %v542
        %v587 = vpop.permute.xlu0 %586
        %v589 = vlaneseq
        %v590 = vshrl.u32 %v589, 7
        %v591 = vsub.s32 0, %v590
        %v592 = vrot.slane %v572, %v591
        %v593 = vmul.f32 %v575, %v592
        %v594 = vmul.f32 %v579, %v592
        %v595 = vmul.f32 %v583, %v592
        %v596 = vmul.f32 %v587, %v592
        %v597 = vadd.f32 %v568, %v593
        %v598 = vadd.f32 %v569, %v594
        %v599 = vadd.f32 %v570, %v595
        %v600 = vadd.f32 %v571, %v596
        %v601 = vld [vmem:[%s3 + $0x2] sm:$0x1]
        %602 = vset.pattern.permute.xlu0 2
        %603 = vperm.xlu0 %602, %v539
        %v604 = vpop.permute.xlu0 %603
        %606 = vset.pattern.permute.xlu0 2
        %607 = vperm.xlu0 %606, %v540
        %v608 = vpop.permute.xlu0 %607
        %610 = vset.pattern.permute.xlu0 2
        %611 = vperm.xlu0 %610, %v541
        %v612 = vpop.permute.xlu0 %611
        %614 = vset.pattern.permute.xlu0 2
        %615 = vperm.xlu0 %614, %v542
        %v616 = vpop.permute.xlu0 %615
        %v618 = vlaneseq
        %v619 = vshrl.u32 %v618, 7
        %v620 = vsub.s32 0, %v619
        %v621 = vrot.slane %v601, %v620
        %v622 = vmul.f32 %v604, %v621
        %v623 = vmul.f32 %v608, %v621
        %v624 = vmul.f32 %v612, %v621
        %v625 = vmul.f32 %v616, %v621
        %v626 = vadd.f32 %v597, %v622
        %v627 = vadd.f32 %v598, %v623
        %v628 = vadd.f32 %v599, %v624
        %v629 = vadd.f32 %v600, %v625
        %v630 = vld [vmem:[%s4] sm:$0x1]
        %v632 = vlaneseq
        %v633 = vshrl.u32 %v632, 7
        %v634 = vsub.s32 0, %v633
        %v635 = vrot.slane %v630, %v634
        %v637 = vadd.f32 %v626, %v635
        %v638 = vadd.f32 %v627, %v635
        %v639 = vadd.f32 %v628, %v635
        %v640 = vadd.f32 %v629, %v635
        %v641 = vxor.u32 %v637, 2147483648
        %v642 = vxor.u32 %v638, 2147483648
        %v643 = vxor.u32 %v639, 2147483648
        %v644 = vxor.u32 %v640, 2147483648
        %v645 = vmul.f32 %v641, 1.442695
        %v646 = vpow.pop %v645
        %v647 = vmul.f32 %v642, 1.442695
        %v648 = vpow.pop %v647
        %v649 = vmul.f32 %v643, 1.442695
        %v650 = vpow.pop %v649
        %v651 = vmul.f32 %v644, 1.442695
        %v652 = vpow.pop %v651
        %v653 = vadd.f32 %v646, 1.0
        %v654 = vadd.f32 %v648, 1.0
        %v655 = vadd.f32 %v650, 1.0
        %v656 = vadd.f32 %v652, 1.0
        %v657 = vrcp.pop %v653
        %v658 = vmul.f32 1.0, %v657
        %v659 = vrcp.pop %v654
        %v660 = vmul.f32 1.0, %v659
        %v661 = vrcp.pop %v655
        %v662 = vmul.f32 1.0, %v661
        %v663 = vrcp.pop %v656
        %v664 = vmul.f32 1.0, %v663
        %v665 = vmul.f32 %v637, %v658
        %v666 = vmul.f32 %v638, %v660
        %v667 = vmul.f32 %v639, %v662
        %v668 = vmul.f32 %v640, %v664
        %v669 = vpack.c.bf16 %v666, %v665
        %v670 = vpack.c.bf16 %v668, %v667
        %v673 = vunpack.c.l.b16 %v669
        %v674 = vunpack.c.h.b16 %v669
        %v675 = vunpack.c.l.b16 %v670
        %v676 = vunpack.c.h.b16 %v670
        %v677 = vpack.c.b16 %v673, %v673
        %v678 = vpack.c.b16 %v674, %v674
        %v679 = vpack.c.b16 %v675, %v675
        %v680 = vpack.c.b16 %v676, %v676
        %vm681 = vsmask.f32 4368
        %vm682 = vmor %vm508, %vm681
        %v684 = vshrl.u32 %v677, 16
        %v686 = vrot.slane %v684, 7
        %v687 = vshll.u32 %v677, 16
        %v689 = vor.u32 %v686, %v687
        %v690 = vrot.slane %v686, 4
        %v692 = vshrl.u32 %v678, 16
        %v694 = vrot.slane %v692, 7
        %v695 = vshll.u32 %v678, 16
        %v697 = vor.u32 %v694, %v695
        %v698 = vsel %vm682, %v690, %v697
        %v699 = vrot.slane %v694, 4
        %v701 = vshrl.u32 %v679, 16
        %v703 = vrot.slane %v701, 7
        %v704 = vshll.u32 %v679, 16
        %v706 = vor.u32 %v703, %v704
        %v707 = vsel %vm682, %v699, %v706
        %v708 = vrot.slane %v703, 4
        %v710 = vshrl.u32 %v680, 16
        %v712 = vrot.slane %v710, 7
        %v713 = vshll.u32 %v680, 16
        %v715 = vor.u32 %v712, %v713
        %v716 = vsel %vm682, %v708, %v715
        %v717 = vrot.slane %v712, 4
        %vm723 = vcmask 125952
        %vm724 = vmand %vm723, %vm513
        %v725 = vld [vmem:[#allocation2] sm:$0xf]
        %v726 = vsel %vm724, %v689, %v725
        %727 = vst [vmem:[#allocation2] sm:$0xf] %v726
        %vm728 = vcmask 125952
        %729 = vst.msk [vmem:[#allocation2 + $0x4] sm:$0xf] %vm728, %v698
        %730 = vst.msk [vmem:[#allocation2 + $0x8] sm:$0xf] %vm728, %v707
        %731 = vst.msk [vmem:[#allocation2 + $0xc] sm:$0xf] %vm728, %v716
        %v732 = vld [vmem:[#allocation2 + $0x10] sm:$0x1]
        %v733 = vsel %vm509, %v717, %v732
        %734 = vst [vmem:[#allocation2 + $0x10] sm:$0x1] %v733
        %v735 = vld [vmem:[#allocation2] sm:$0xf]
        %v736 = vld [vmem:[#allocation2 + $0x4] sm:$0xf]
        %v737 = vld [vmem:[#allocation2 + $0x8] sm:$0xf]
        %v738 = vld [vmem:[#allocation2 + $0xc] sm:$0xf]
        %v739 = vld [vmem:[#allocation2 + $0x10] sm:$0x1]
        %v740 = vld [vmem:[#allocation2] sm:$0xe]
        %v745 = vunpack.c.l.b16 %v735
        %v746 = vunpack.c.l.b16 %v736
        %v747 = vunpack.c.l.b16 %v737
        %v748 = vunpack.c.l.b16 %v738
        %v749 = vpack.c.b16 %v746, %v745
        %v750 = vpack.c.b16 %v748, %v747
        %v752 = vunpack.c.l.b16 %v739
        %v753 = vpack.c.b16 %v752, %v752
        %vm754 = vsmask.f32 7424
        %v756 = vshrl.u32 %v749, 16
        %v758 = vshll.u32 %v749, 16
        %v760 = vrot.slane %v758, 1
        %v761 = vor.u32 %v756, %v760
        %v763 = vshll.u32 %v750, 16
        %v765 = vrot.slane %v763, 1
        %v766 = vsel %vm754, %v761, %v765
        %v767 = vshrl.u32 %v750, 16
        %v769 = vor.u32 %v767, %v765
        %v771 = vshll.u32 %v753, 16
        %v773 = vrot.slane %v771, 1
        %v774 = vsel %vm754, %v769, %v773
        %775 = vrot.lane.b32.xlu0 %v766, 16
        %v776 = vpop.permute.xlu0 %775
        %777 = vrot.lane.b32.xlu0 %v774, 16
        %v778 = vpop.permute.xlu0 %777
        %v780 = vunpack.c.l.b16 %v740
        %v781 = vpack.c.b16 %v746, %v780
        %vm782 = vcmask 1046528
        %v783 = vrot.slane %v781, 1
        %v784 = vrot.slane %v750, 1
        %v785 = vsel %vm782, %v783, %v784
        %v786 = vrot.slane %v753, 1
        %v787 = vsel %vm782, %v784, %v786
        %788 = vrot.lane.b32.xlu0 %v785, 32
        %v789 = vpop.permute.xlu0 %788
        %790 = vrot.lane.b32.xlu0 %v787, 32
        %v791 = vpop.permute.xlu0 %790
        %vm792 = vcmask 130048
        %v794 = vsel %vm792, %v749, %v776
        %v796 = vsel %vm792, %v750, %v778
        %vm797 = vcmask 261120
        %v799 = vsel %vm797, %v794, %v789
        %v801 = vsel %vm797, %v796, %v791
        %v802 = vld [vmem:[%s5] sm:$0xf]
        %v803 = vld [vmem:[%s5 + $0x4] sm:$0xf]
        %v804 = vld [vmem:[%s5 + $0x8] sm:$0xf]
        %v805 = vld [vmem:[%s5 + $0xc] sm:$0xf]
        %v806 = vld [vmem:[%s5 + $0x10] sm:$0xf]
        %v807 = vld [vmem:[%s5 + $0x14] sm:$0xf]
        %v808 = vld [vmem:[#allocation6] sm:$0x1]
        %v810 = vlaneseq
        %v811 = vshrl.u32 %v810, 7
        %v812 = vsub.s32 0, %v811
        %v813 = vrot.slane %v808, %v812
        %v821 = vunpack.c.l.b16 %v802
        %v822 = vunpack.c.l.b16 %v803
        %v823 = vunpack.c.l.b16 %v804
        %v824 = vunpack.c.l.b16 %v805
        %v825 = vunpack.c.l.b16 %v806
        %v826 = vunpack.c.l.b16 %v807
        %v827 = vpack.c.b16 %v822, %v821
        %v828 = vpack.c.b16 %v824, %v823
        %v829 = vpack.c.b16 %v826, %v825
        %vm833 = vcmask 392192
        %v834 = vsel %vm833, %v799, 0
        %v836 = vsel %vm833, %v801, 0
        %838 = vmatprep.subr.bf16.mxu0 0
        %839 = vmatpush1.bf16.msra.mxu0 %v827
        %840 = vmatprep.subr.bf16.mxu0 0
        %841 = vmatpush1.bf16.msra.mxu0 %v828
        %842 = vmatprep.subr.bf16.mxu0 0
        %843 = vmatpush1.bf16.msra.mxu0 %v829
        %844 = vmatprep.subr.bf16.mxu0 0
        %845 = vmatpush1.bf16.msra.mxu0 0
        %846 = vmatprep.subr.bf16.mxu0 0
        %847 = vmatpush1.bf16.msra.mxu0 0
        %848 = vmatprep.subr.bf16.mxu0 0
        %849 = vmatpush1.bf16.msra.mxu0 0
        %850 = vmatprep.subr.bf16.mxu0 0
        %851 = vmatpush1.bf16.msra.mxu0 0
        %852 = vmatprep.subr.bf16.mxu0 0
        %853 = vmatpush1.bf16.msra.mxu0 0
        %854 = vmatprep.subr.bf16.mxu0 0
        %855 = vmatpush1.bf16.msra.mxu0 0
        %856 = vmatprep.subr.bf16.mxu0 0
        %857 = vmatpush1.bf16.msra.mxu0 0
        %858 = vmatprep.subr.bf16.mxu0 0
        %859 = vmatpush1.bf16.msra.mxu0 0
        %860 = vmatprep.subr.bf16.mxu0 0
        %861 = vmatpush1.bf16.msra.mxu0 0
        %862 = vmatprep.subr.bf16.mxu0 0
        %863 = vmatpush1.bf16.msra.mxu0 0
        %864 = vmatprep.subr.bf16.mxu0 0
        %865 = vmatpush1.bf16.msra.mxu0 0
        %866 = vmatprep.subr.bf16.mxu0 0
        %867 = vmatpush1.bf16.msra.mxu0 0
        %868 = vmatprep.subr.bf16.mxu0 0
        %869 = vmatpush1.bf16.msra.mxu0 0
        %870 = vmatprep.mubr.bf16.mxu0 0
        %871 = vmatmul.mubr.bf16.gmra.mrb[0].mxu0 %v834
        %v872 = vpop.f32.mrb[0].mxu0
        %v873 = vadd.f32 %v813, %v872
        %v874 = vpop.f32.mrb[0].mxu0
        %v875 = vpop.f32.mrb[0].mxu0
        %v876 = vadd.f32 %v813, %v875
        %v877 = vpop.f32.mrb[0].mxu0
        %878 = vmatprep.mubr.bf16.mxu0 0
        %879 = vmatmul.mubr.bf16.gmra.mrb[0].mxu0 %v836
        %v880 = vpop.f32.mrb[0].mxu0
        %v881 = vadd.f32 %v813, %v880
        %v882 = vpop.f32.mrb[0].mxu0
        %v883 = vpop.f32.mrb[0].mxu0
        %v884 = vadd.f32 %v813, %v883
        %v885 = vpop.f32.mrb[0].mxu0
        %886 = vdwg.mxu0
        %v887 = vxor.u32 %v873, 2147483648
        %v888 = vxor.u32 %v876, 2147483648
        %v889 = vxor.u32 %v881, 2147483648
        %v890 = vxor.u32 %v884, 2147483648
        %v891 = vmul.f32 %v887, 1.442695
        %v892 = vpow.pop %v891
        %v893 = vmul.f32 %v888, 1.442695
        %v894 = vpow.pop %v893
        %v895 = vmul.f32 %v889, 1.442695
        %v896 = vpow.pop %v895
        %v897 = vmul.f32 %v890, 1.442695
        %v898 = vpow.pop %v897
        %v899 = vadd.f32 %v892, 1.0
        %v900 = vadd.f32 %v894, 1.0
        %v901 = vadd.f32 %v896, 1.0
        %v902 = vadd.f32 %v898, 1.0
        %v903 = vrcp.pop %v899
        %v904 = vmul.f32 1.0, %v903
        %v905 = vrcp.pop %v900
        %v906 = vmul.f32 1.0, %v905
        %v907 = vrcp.pop %v901
        %v908 = vmul.f32 1.0, %v907
        %v909 = vrcp.pop %v902
        %v910 = vmul.f32 1.0, %v909
        %v911 = vmul.f32 %v873, %v904
        %v912 = vmul.f32 %v876, %v906
        %v913 = vmul.f32 %v881, %v908
        %v914 = vmul.f32 %v884, %v910
        %v915 = vpack.c.bf16 %v912, %v911
        %v916 = vpack.c.bf16 %v914, %v913
        %v919 = vunpack.c.l.b16 %v915
        %v920 = vunpack.c.h.b16 %v915
        %v921 = vunpack.c.l.b16 %v916
        %v922 = vunpack.c.h.b16 %v916
        %v923 = vpack.c.b16 %v919, %v919
        %v924 = vpack.c.b16 %v920, %v920
        %v925 = vpack.c.b16 %v921, %v921
        %v926 = vpack.c.b16 %v922, %v922
        %v928 = vshrl.u32 %v923, 16
        %v930 = vrot.slane %v928, 7
        %v931 = vshll.u32 %v923, 16
        %v933 = vor.u32 %v930, %v931
        %v934 = vrot.slane %v930, 4
        %v936 = vshrl.u32 %v924, 16
        %v938 = vrot.slane %v936, 7
        %v939 = vshll.u32 %v924, 16
        %v941 = vor.u32 %v938, %v939
        %v942 = vsel %vm682, %v934, %v941
        %v943 = vrot.slane %v938, 4
        %v945 = vshrl.u32 %v925, 16
        %v947 = vrot.slane %v945, 7
        %v948 = vshll.u32 %v925, 16
        %v950 = vor.u32 %v947, %v948
        %v951 = vsel %vm682, %v943, %v950
        %v952 = vrot.slane %v947, 4
        %v954 = vshrl.u32 %v926, 16
        %v956 = vrot.slane %v954, 7
        %v957 = vshll.u32 %v926, 16
        %v959 = vor.u32 %v956, %v957
        %v960 = vsel %vm682, %v952, %v959
        %v961 = vrot.slane %v956, 4
        %v967 = vld [vmem:[#allocation3] sm:$0xf]
        %v968 = vsel %vm724, %v933, %v967
        %969 = vst [vmem:[#allocation3] sm:$0xf] %v968
        %970 = vst.msk [vmem:[#allocation3 + $0x4] sm:$0xf] %vm728, %v942
        %971 = vst.msk [vmem:[#allocation3 + $0x8] sm:$0xf] %vm728, %v951
        %972 = vst.msk [vmem:[#allocation3 + $0xc] sm:$0xf] %vm728, %v960
        %v973 = vld [vmem:[#allocation3 + $0x10] sm:$0x1]
        %v974 = vsel %vm509, %v961, %v973
        %975 = vst [vmem:[#allocation3 + $0x10] sm:$0x1] %v974
        %v976 = vld [vmem:[#allocation3] sm:$0xf]
        %v977 = vld [vmem:[#allocation3 + $0x4] sm:$0xf]
        %v978 = vld [vmem:[#allocation3 + $0x8] sm:$0xf]
        %v979 = vld [vmem:[#allocation3 + $0xc] sm:$0xf]
        %v980 = vld [vmem:[#allocation3 + $0x10] sm:$0x1]
        %v981 = vld [vmem:[#allocation3] sm:$0xe]
        %v986 = vunpack.c.l.b16 %v976
        %v987 = vunpack.c.l.b16 %v977
        %v988 = vunpack.c.l.b16 %v978
        %v989 = vunpack.c.l.b16 %v979
        %v990 = vpack.c.b16 %v987, %v986
        %v991 = vpack.c.b16 %v989, %v988
        %v993 = vunpack.c.l.b16 %v980
        %v994 = vpack.c.b16 %v993, %v993
        %v996 = vshrl.u32 %v990, 16
        %v998 = vshll.u32 %v990, 16
        %v1000 = vrot.slane %v998, 1
        %v1001 = vor.u32 %v996, %v1000
        %v1003 = vshll.u32 %v991, 16
        %v1005 = vrot.slane %v1003, 1
        %v1006 = vsel %vm754, %v1001, %v1005
        %v1007 = vshrl.u32 %v991, 16
        %v1009 = vor.u32 %v1007, %v1005
        %v1011 = vshll.u32 %v994, 16
        %v1013 = vrot.slane %v1011, 1
        %v1014 = vsel %vm754, %v1009, %v1013
        %1015 = vrot.lane.b32.xlu0 %v1006, 16
        %v1016 = vpop.permute.xlu0 %1015
        %1017 = vrot.lane.b32.xlu0 %v1014, 16
        %v1018 = vpop.permute.xlu0 %1017
        %v1020 = vunpack.c.l.b16 %v981
        %v1021 = vpack.c.b16 %v987, %v1020
        %v1022 = vrot.slane %v1021, 1
        %v1023 = vrot.slane %v991, 1
        %v1024 = vsel %vm782, %v1022, %v1023
        %v1025 = vrot.slane %v994, 1
        %v1026 = vsel %vm782, %v1023, %v1025
        %1027 = vrot.lane.b32.xlu0 %v1024, 32
        %v1028 = vpop.permute.xlu0 %1027
        %1029 = vrot.lane.b32.xlu0 %v1026, 32
        %v1030 = vpop.permute.xlu0 %1029
        %v1032 = vsel %vm792, %v990, %v1016
        %v1034 = vsel %vm792, %v991, %v1018
        %v1036 = vsel %vm797, %v1032, %v1028
        %v1039 = vsel %vm797, %v1034, %v1030
        %v1041 = vld [vmem:[%s1] sm:$0xf]
        %v1042 = vld [vmem:[%s1 + $0x4] sm:$0xf]
        %v1045 = vunpack.c.l.b16 %v1041
        %v1046 = vunpack.c.l.b16 %v1042
        %v1047 = vpack.c.b16 %v1046, %v1045
        %v1049 = vsel %vm797, %v1047, 0
        %1051 = vmatprep.subr.bf16.mxu0 0
        %1052 = vmatpush1.bf16.msra.mxu0 %v1036
        %1053 = vmatprep.subr.bf16.mxu0 0
        %1054 = vmatpush1.bf16.msra.mxu0 %v1039
        %1055 = vmatprep.subr.bf16.mxu0 0
        %1056 = vmatpush1.bf16.msra.mxu0 0
        %1057 = vmatprep.subr.bf16.mxu0 0
        %1058 = vmatpush1.bf16.msra.mxu0 0
        %1059 = vmatprep.subr.bf16.mxu0 0
        %1060 = vmatpush1.bf16.msra.mxu0 0
        %1061 = vmatprep.subr.bf16.mxu0 0
        %1062 = vmatpush1.bf16.msra.mxu0 0
        %1063 = vmatprep.subr.bf16.mxu0 0
        %1064 = vmatpush1.bf16.msra.mxu0 0
        %1065 = vmatprep.subr.bf16.mxu0 0
        %1066 = vmatpush1.bf16.msra.mxu0 0
        %1067 = vmatprep.subr.bf16.mxu0 0
        %1068 = vmatpush1.bf16.msra.mxu0 0
        %1069 = vmatprep.subr.bf16.mxu0 0
        %1070 = vmatpush1.bf16.msra.mxu0 0
        %1071 = vmatprep.subr.bf16.mxu0 0
        %1072 = vmatpush1.bf16.msra.mxu0 0
        %1073 = vmatprep.subr.bf16.mxu0 0
        %1074 = vmatpush1.bf16.msra.mxu0 0
        %1075 = vmatprep.subr.bf16.mxu0 0
        %1076 = vmatpush1.bf16.msra.mxu0 0
        %1077 = vmatprep.subr.bf16.mxu0 0
        %1078 = vmatpush1.bf16.msra.mxu0 0
        %1079 = vmatprep.subr.bf16.mxu0 0
        %1080 = vmatpush1.bf16.msra.mxu0 0
        %1081 = vmatprep.subr.bf16.mxu0 0
        %1082 = vmatpush1.bf16.msra.mxu0 0
        %1083 = vmatprep.mubr.bf16.mxu0 0
        %1084 = vmatmul.mubr.bf16.gmra.mrb[0].mxu0 %v1049
        %v1085 = vpop.f32.mrb[0].mxu0
        %v1086 = vadd.f32 0.0, %v1085
        %v1087 = vpop.f32.mrb[0].mxu0
        %v1088 = vpop.f32.mrb[0].mxu0
        %v1089 = vadd.f32 0.0, %v1088
        %v1090 = vpop.f32.mrb[0].mxu0
        %1091 = vdwg.mxu0
        %v1092 = vpack.c.bf16 %v1089, %v1086
        %v1093 = vld [vmem:[%s7] sm:$0xf]
        %v1094 = vld [vmem:[%s7 + $0x4] sm:$0xf]
        %v1095 = vld [vmem:[%s7 + $0x8] sm:$0xf]
        %v1096 = vld [vmem:[%s7 + $0xc] sm:$0xf]
        %v1097 = vld [vmem:[%s7 + $0x10] sm:$0xf]
        %v1098 = vld [vmem:[%s7 + $0x14] sm:$0xf]
        %v1099 = vld [vmem:[#allocation8] sm:$0x1]
        %v1101 = vlaneseq
        %v1102 = vshrl.u32 %v1101, 7
        %v1103 = vsub.s32 0, %v1102
        %v1104 = vrot.slane %v1099, %v1103
        %v1112 = vunpack.c.l.b16 %v1093
        %v1113 = vunpack.c.l.b16 %v1094
        %v1114 = vunpack.c.l.b16 %v1095
        %v1115 = vunpack.c.l.b16 %v1096
        %v1116 = vunpack.c.l.b16 %v1097
        %v1117 = vunpack.c.l.b16 %v1098
        %v1118 = vpack.c.b16 %v1113, %v1112
        %v1119 = vpack.c.b16 %v1115, %v1114
        %v1120 = vpack.c.b16 %v1117, %v1116
        %v1125 = vsel %vm833, %v1092, 0
        %1127 = vmatprep.subr.bf16.mxu0 0
        %1128 = vmatpush1.bf16.msra.mxu0 %v1118
        %1129 = vmatprep.subr.bf16.mxu0 0
        %1130 = vmatpush1.bf16.msra.mxu0 %v1119
        %1131 = vmatprep.subr.bf16.mxu0 0
        %1132 = vmatpush1.bf16.msra.mxu0 %v1120
        %1133 = vmatprep.subr.bf16.mxu0 0
        %1134 = vmatpush1.bf16.msra.mxu0 0
        %1135 = vmatprep.subr.bf16.mxu0 0
        %1136 = vmatpush1.bf16.msra.mxu0 0
        %1137 = vmatprep.subr.bf16.mxu0 0
        %1138 = vmatpush1.bf16.msra.mxu0 0
        %1139 = vmatprep.subr.bf16.mxu0 0
        %1140 = vmatpush1.bf16.msra.mxu0 0
        %1141 = vmatprep.subr.bf16.mxu0 0
        %1142 = vmatpush1.bf16.msra.mxu0 0
        %1143 = vmatprep.subr.bf16.mxu0 0
        %1144 = vmatpush1.bf16.msra.mxu0 0
        %1145 = vmatprep.subr.bf16.mxu0 0
        %1146 = vmatpush1.bf16.msra.mxu0 0
        %1147 = vmatprep.subr.bf16.mxu0 0
        %1148 = vmatpush1.bf16.msra.mxu0 0
        %1149 = vmatprep.subr.bf16.mxu0 0
        %1150 = vmatpush1.bf16.msra.mxu0 0
        %1151 = vmatprep.subr.bf16.mxu0 0
        %1152 = vmatpush1.bf16.msra.mxu0 0
        %1153 = vmatprep.subr.bf16.mxu0 0
        %1154 = vmatpush1.bf16.msra.mxu0 0
        %1155 = vmatprep.subr.bf16.mxu0 0
        %1156 = vmatpush1.bf16.msra.mxu0 0
        %1157 = vmatprep.subr.bf16.mxu0 0
        %1158 = vmatpush1.bf16.msra.mxu0 0
        %1159 = vmatprep.mubr.bf16.mxu0 0
        %1160 = vmatmul.mubr.bf16.gmra.mrb[0].mxu0 %v1125
        %v1161 = vpop.f32.mrb[0].mxu0
        %v1162 = vadd.f32 %v1104, %v1161
        %v1163 = vpop.f32.mrb[0].mxu0
        %v1164 = vpop.f32.mrb[0].mxu0
        %v1165 = vadd.f32 %v1104, %v1164
        %v1166 = vpop.f32.mrb[0].mxu0
        %1167 = vdwg.mxu0
        %v1168 = vxor.u32 %v1162, 2147483648
        %v1169 = vxor.u32 %v1165, 2147483648
        %v1170 = vmul.f32 %v1168, 1.442695
        %v1171 = vpow.pop %v1170
        %v1172 = vmul.f32 %v1169, 1.442695
        %v1173 = vpow.pop %v1172
        %v1174 = vadd.f32 %v1171, 1.0
        %v1175 = vadd.f32 %v1173, 1.0
        %v1176 = vrcp.pop %v1174
        %v1177 = vmul.f32 1.0, %v1176
        %v1178 = vrcp.pop %v1175
        %v1179 = vmul.f32 1.0, %v1178
        %v1180 = vmul.f32 %v1162, %v1177
        %v1181 = vmul.f32 %v1165, %v1179
        %v1182 = vpack.c.bf16 %v1181, %v1180
        %v1184 = vunpack.c.l.b16 %v1182
        %v1185 = vunpack.c.h.b16 %v1182
        %v1186 = vpack.c.b16 %v1184, %v1184
        %v1187 = vpack.c.b16 %v1185, %v1185
        %v1189 = vshrl.u32 %v1186, 16
        %v1191 = vrot.slane %v1189, 7
        %v1192 = vshll.u32 %v1186, 16
        %v1194 = vor.u32 %v1191, %v1192
        %v1195 = vrot.slane %v1191, 4
        %v1197 = vshrl.u32 %v1187, 16
        %v1199 = vrot.slane %v1197, 7
        %v1200 = vshll.u32 %v1187, 16
        %v1202 = vor.u32 %v1199, %v1200
        %v1203 = vsel %vm682, %v1195, %v1202
        %v1204 = vrot.slane %v1199, 4
        %vm1208 = vcmask 1043456
        %vm1209 = vmand %vm1208, %vm513
        %v1210 = vld [vmem:[#allocation4] sm:$0xf]
        %v1211 = vsel %vm1209, %v1194, %v1210
        %1212 = vst [vmem:[#allocation4] sm:$0xf] %v1211
        %1213 = vst [vmem:[#allocation4 + $0x4] sm:$0xf] %v1203
        %v1214 = vld [vmem:[#allocation4 + $0x8] sm:$0x1]
        %v1215 = vsel %vm525, %v1204, %v1214
        %1216 = vst [vmem:[#allocation4 + $0x8] sm:$0x1] %v1215
        %v1217 = vld [vmem:[#allocation4] sm:$0xf]
        %v1218 = vld [vmem:[#allocation4 + $0x4] sm:$0xf]
        %v1219 = vld [vmem:[#allocation4 + $0x8] sm:$0x1]
        %v1220 = vld [vmem:[#allocation4] sm:$0xe]
        %v1223 = vunpack.c.l.b16 %v1217
        %v1224 = vunpack.c.l.b16 %v1218
        %v1225 = vpack.c.b16 %v1224, %v1223
        %v1228 = vunpack.c.l.b16 %v1219
        %v1229 = vpack.c.b16 %v1228, %v1228
        %v1231 = vshrl.u32 %v1225, 16
        %v1233 = vshll.u32 %v1225, 16
        %v1235 = vrot.slane %v1233, 1
        %v1236 = vor.u32 %v1231, %v1235
        %v1238 = vshll.u32 %v1229, 16
        %v1240 = vrot.slane %v1238, 1
        %v1241 = vsel %vm754, %v1236, %v1240
        %v1244 = vunpack.c.l.b16 %v1220
        %v1245 = vpack.c.b16 %v1224, %v1244
        %v1246 = vrot.slane %v1245, 1
        %v1247 = vrot.slane %v1229, 1
        %v1248 = vsel %vm782, %v1246, %v1247
        %v1250 = vld [vmem:[#allocation10] sm:$0xf]
        %v1251 = vld [vmem:[#allocation10 + $0x4] sm:$0xf]
        %v1252 = vld [vmem:[#allocation10 + $0x8] sm:$0xf]
        %v1253 = vld [vmem:[#allocation10 + $0xc] sm:$0xf]
        %v1254 = vld [vmem:[#allocation10 + $0x10] sm:$0xf]
        %v1255 = vld [vmem:[#allocation10 + $0x14] sm:$0xf]
        %v1256 = vld [vmem:[#allocation10 + $0x18] sm:$0xf]
        %v1257 = vld [vmem:[#allocation10 + $0x1c] sm:$0xf]
        %v1258 = vld [vmem:[#allocation10 + $0x20] sm:$0xf]
        %v1259 = vld [vmem:[#allocation10 + $0x24] sm:$0xf]
        %v1260 = vld [vmem:[#allocation10 + $0x28] sm:$0xf]
        %v1261 = vld [vmem:[#allocation10 + $0x2c] sm:$0xf]
        %v1262 = vld [vmem:[#allocation10 + $0x30] sm:$0xf]
        %v1263 = vld [vmem:[#allocation10 + $0x34] sm:$0xf]
        %v1264 = vld [vmem:[#allocation10 + $0x38] sm:$0xf]
        %v1265 = vld [vmem:[#allocation10 + $0x3c] sm:$0xf]
        %v1266 = vld [vmem:[#allocation10 + $0x40] sm:$0xf]
        %v1267 = vld [vmem:[#allocation10 + $0x44] sm:$0xf]
        %v1268 = vld [vmem:[#allocation10 + $0x48] sm:$0xf]
        %v1269 = vld [vmem:[#allocation10 + $0x4c] sm:$0xf]
        %v1270 = vld [vmem:[#allocation10 + $0x50] sm:$0xf]
        %v1271 = vld [vmem:[#allocation10 + $0x54] sm:$0xf]
        %v1272 = vld [vmem:[#allocation10 + $0x58] sm:$0xf]
        %v1273 = vld [vmem:[#allocation10 + $0x5c] sm:$0xf]
        %v1274 = vld [vmem:[#allocation10 + $0x60] sm:$0xf]
        %v1275 = vld [vmem:[#allocation10 + $0x64] sm:$0xf]
        %v1276 = vld [vmem:[#allocation10 + $0x68] sm:$0xf]
        %v1277 = vld [vmem:[#allocation10 + $0x6c] sm:$0xf]
        %v1278 = vld [vmem:[#allocation10 + $0x70] sm:$0xf]
        %v1279 = vld [vmem:[#allocation10 + $0x74] sm:$0xf]
        %v1280 = vld [vmem:[#allocation10 + $0x78] sm:$0xf]
        %v1281 = vld [vmem:[#allocation10 + $0x7c] sm:$0xf]
        %v1282 = vld [vmem:[#allocation10 + $0x80] sm:$0xf]
        %v1283 = vld [vmem:[#allocation10 + $0x84] sm:$0xf]
        %v1284 = vld [vmem:[#allocation10 + $0x88] sm:$0xf]
        %v1285 = vld [vmem:[#allocation10 + $0x8c] sm:$0xf]
        %v1286 = vld [vmem:[#allocation10 + $0x90] sm:$0xf]
        %v1287 = vld [vmem:[#allocation10 + $0x94] sm:$0xf]
        %v1288 = vld [vmem:[#allocation10 + $0x98] sm:$0xf]
        %v1289 = vld [vmem:[#allocation10 + $0x9c] sm:$0xf]
        %v1290 = vld [vmem:[#allocation10 + $0xa0] sm:$0xf]
        %v1291 = vld [vmem:[#allocation10 + $0xa4] sm:$0xf]
        %v1292 = vld [vmem:[#allocation10 + $0xa8] sm:$0xf]
        %v1293 = vld [vmem:[#allocation10 + $0xac] sm:$0xf]
        %v1294 = vld [vmem:[#allocation10 + $0xb0] sm:$0xf]
        %v1295 = vld [vmem:[#allocation10 + $0xb4] sm:$0xf]
        %v1296 = vld [vmem:[#allocation10 + $0xb8] sm:$0xf]
        %v1297 = vld [vmem:[#allocation10 + $0xbc] sm:$0xf]
        %v1298 = vld [vmem:[#allocation11] sm:$0x1]
        %v1300 = vlaneseq
        %v1301 = vshrl.u32 %v1300, 7
        %v1302 = vsub.s32 0, %v1301
        %v1303 = vrot.slane %v1298, %v1302
        %v1353 = vunpack.c.l.b16 %v1250
        %v1354 = vunpack.c.l.b16 %v1251
        %v1355 = vunpack.c.l.b16 %v1252
        %v1356 = vunpack.c.l.b16 %v1253
        %v1357 = vunpack.c.l.b16 %v1254
        %v1358 = vunpack.c.l.b16 %v1255
        %v1359 = vunpack.c.l.b16 %v1256
        %v1360 = vunpack.c.l.b16 %v1257
        %v1361 = vunpack.c.l.b16 %v1258
        %v1362 = vunpack.c.l.b16 %v1259
        %v1363 = vunpack.c.l.b16 %v1260
        %v1364 = vunpack.c.l.b16 %v1261
        %v1365 = vunpack.c.l.b16 %v1262
        %v1366 = vunpack.c.l.b16 %v1263
        %v1367 = vunpack.c.l.b16 %v1264
        %v1368 = vunpack.c.l.b16 %v1265
        %v1369 = vunpack.c.l.b16 %v1266
        %v1370 = vunpack.c.l.b16 %v1267
        %v1371 = vunpack.c.l.b16 %v1268
        %v1372 = vunpack.c.l.b16 %v1269
        %v1373 = vunpack.c.l.b16 %v1270
        %v1374 = vunpack.c.l.b16 %v1271
        %v1375 = vunpack.c.l.b16 %v1272
        %v1376 = vunpack.c.l.b16 %v1273
        %v1377 = vunpack.c.l.b16 %v1274
        %v1378 = vunpack.c.l.b16 %v1275
        %v1379 = vunpack.c.l.b16 %v1276
        %v1380 = vunpack.c.l.b16 %v1277
        %v1381 = vunpack.c.l.b16 %v1278
        %v1382 = vunpack.c.l.b16 %v1279
        %v1383 = vunpack.c.l.b16 %v1280
        %v1384 = vunpack.c.l.b16 %v1281
        %v1385 = vunpack.c.l.b16 %v1282
        %v1386 = vunpack.c.l.b16 %v1283
        %v1387 = vunpack.c.l.b16 %v1284
        %v1388 = vunpack.c.l.b16 %v1285
        %v1389 = vunpack.c.l.b16 %v1286
        %v1390 = vunpack.c.l.b16 %v1287
        %v1391 = vunpack.c.l.b16 %v1288
        %v1392 = vunpack.c.l.b16 %v1289
        %v1393 = vunpack.c.l.b16 %v1290
        %v1394 = vunpack.c.l.b16 %v1291
        %v1395 = vunpack.c.l.b16 %v1292
        %v1396 = vunpack.c.l.b16 %v1293
        %v1397 = vunpack.c.l.b16 %v1294
        %v1398 = vunpack.c.l.b16 %v1295
        %v1399 = vunpack.c.l.b16 %v1296
        %v1400 = vunpack.c.l.b16 %v1297
        %v1401 = vpack.c.b16 %v1354, %v1353
        %v1402 = vpack.c.b16 %v1356, %v1355
        %v1403 = vpack.c.b16 %v1358, %v1357
        %v1404 = vpack.c.b16 %v1360, %v1359
        %v1405 = vpack.c.b16 %v1362, %v1361
        %v1406 = vpack.c.b16 %v1364, %v1363
        %v1407 = vpack.c.b16 %v1366, %v1365
        %v1408 = vpack.c.b16 %v1368, %v1367
        %v1409 = vpack.c.b16 %v1370, %v1369
        %v1410 = vpack.c.b16 %v1372, %v1371
        %v1411 = vpack.c.b16 %v1374, %v1373
        %v1412 = vpack.c.b16 %v1376, %v1375
        %v1413 = vpack.c.b16 %v1378, %v1377
        %v1414 = vpack.c.b16 %v1380, %v1379
        %v1415 = vpack.c.b16 %v1382, %v1381
        %v1416 = vpack.c.b16 %v1384, %v1383
        %v1417 = vpack.c.b16 %v1386, %v1385
        %v1418 = vpack.c.b16 %v1388, %v1387
        %v1419 = vpack.c.b16 %v1390, %v1389
        %v1420 = vpack.c.b16 %v1392, %v1391
        %v1421 = vpack.c.b16 %v1394, %v1393
        %v1422 = vpack.c.b16 %v1396, %v1395
        %v1423 = vpack.c.b16 %v1398, %v1397
        %v1424 = vpack.c.b16 %v1400, %v1399
        %1449 = vmatprep.subr.bf16.mxu0 0
        %1450 = vmatpush1.bf16.msra.mxu0 %v1401
        %1451 = vmatprep.subr.bf16.mxu0 0
        %1452 = vmatpush1.bf16.msra.mxu0 %v1402
        %1453 = vmatprep.subr.bf16.mxu0 0
        %1454 = vmatpush1.bf16.msra.mxu0 %v1403
        %1455 = vmatprep.subr.bf16.mxu0 0
        %1456 = vmatpush1.bf16.msra.mxu0 %v1404
        %1457 = vmatprep.subr.bf16.mxu0 0
        %1458 = vmatpush1.bf16.msra.mxu0 %v1405
        %1459 = vmatprep.subr.bf16.mxu0 0
        %1460 = vmatpush1.bf16.msra.mxu0 %v1406
        %1461 = vmatprep.subr.bf16.mxu0 0
        %1462 = vmatpush1.bf16.msra.mxu0 %v1407
        %1463 = vmatprep.subr.bf16.mxu0 0
        %1464 = vmatpush1.bf16.msra.mxu0 %v1408
        %1465 = vmatprep.subr.bf16.mxu0 0
        %1466 = vmatpush1.bf16.msra.mxu0 %v1409
        %1467 = vmatprep.subr.bf16.mxu0 0
        %1468 = vmatpush1.bf16.msra.mxu0 %v1410
        %1469 = vmatprep.subr.bf16.mxu0 0
        %1470 = vmatpush1.bf16.msra.mxu0 %v1411
        %1471 = vmatprep.subr.bf16.mxu0 0
        %1472 = vmatpush1.bf16.msra.mxu0 %v1412
        %1473 = vmatprep.subr.bf16.mxu0 0
        %1474 = vmatpush1.bf16.msra.mxu0 %v1413
        %1475 = vmatprep.subr.bf16.mxu0 0
        %1476 = vmatpush1.bf16.msra.mxu0 %v1414
        %1477 = vmatprep.subr.bf16.mxu0 0
        %1478 = vmatpush1.bf16.msra.mxu0 %v1415
        %1479 = vmatprep.subr.bf16.mxu0 0
        %1480 = vmatpush1.bf16.msra.mxu0 %v1416
        %1481 = vmatprep.mubr.bf16.mxu0 %v1241
        %1482 = vmatmul.mubr.bf16.gmra.mrb[0].mxu0 %v1225
        %v1483 = vpop.f32.mrb[0].mxu0
        %v1484 = vadd.f32 %v1303, %v1483
        %v1485 = vpop.f32.mrb[0].mxu0
        %v1486 = vpop.f32.mrb[0].mxu0
        %v1487 = vadd.f32 %v1303, %v1486
        %v1488 = vpop.f32.mrb[0].mxu0
        %1489 = vdwg.mxu0
        %1490 = vmatprep.subr.bf16.mxu0 0
        %1491 = vmatpush1.bf16.msra.mxu0 %v1417
        %1492 = vmatprep.subr.bf16.mxu0 0
        %1493 = vmatpush1.bf16.msra.mxu0 %v1418
        %1494 = vmatprep.subr.bf16.mxu0 0
        %1495 = vmatpush1.bf16.msra.mxu0 %v1419
        %1496 = vmatprep.subr.bf16.mxu0 0
        %1497 = vmatpush1.bf16.msra.mxu0 %v1420
        %1498 = vmatprep.subr.bf16.mxu0 0
        %1499 = vmatpush1.bf16.msra.mxu0 %v1421
        %1500 = vmatprep.subr.bf16.mxu0 0
        %1501 = vmatpush1.bf16.msra.mxu0 %v1422
        %1502 = vmatprep.subr.bf16.mxu0 0
        %1503 = vmatpush1.bf16.msra.mxu0 %v1423
        %1504 = vmatprep.subr.bf16.mxu0 0
        %1505 = vmatpush1.bf16.msra.mxu0 %v1424
        %1506 = vmatprep.subr.bf16.mxu0 0
        %1507 = vmatpush1.bf16.msra.mxu0 0
        %1508 = vmatprep.subr.bf16.mxu0 0
        %1509 = vmatpush1.bf16.msra.mxu0 0
        %1510 = vmatprep.subr.bf16.mxu0 0
        %1511 = vmatpush1.bf16.msra.mxu0 0
        %1512 = vmatprep.subr.bf16.mxu0 0
        %1513 = vmatpush1.bf16.msra.mxu0 0
        %1514 = vmatprep.subr.bf16.mxu0 0
        %1515 = vmatpush1.bf16.msra.mxu0 0
        %1516 = vmatprep.subr.bf16.mxu0 0
        %1517 = vmatpush1.bf16.msra.mxu0 0
        %1518 = vmatprep.subr.bf16.mxu0 0
        %1519 = vmatpush1.bf16.msra.mxu0 0
        %1520 = vmatprep.subr.bf16.mxu0 0
        %1521 = vmatpush1.bf16.msra.mxu0 0
        %1522 = vmatprep.mubr.bf16.mxu0 0
        %1523 = vmatmul.mubr.bf16.gmra.mrb[0].mxu0 %v1248
        %v1524 = vpop.f32.mrb[0].mxu0
        %v1525 = vadd.f32 %v1484, %v1524
        %v1526 = vpop.f32.mrb[0].mxu0
        %v1527 = vpop.f32.mrb[0].mxu0
        %v1528 = vadd.f32 %v1487, %v1527
        %v1529 = vpop.f32.mrb[0].mxu0
        %1530 = vdwg.mxu0
        %v1531 = vxor.u32 %v1525, 2147483648
        %v1532 = vxor.u32 %v1528, 2147483648
        %v1533 = vmul.f32 %v1531, 1.442695
        %v1534 = vpow.pop %v1533
        %v1535 = vmul.f32 %v1532, 1.442695
        %v1536 = vpow.pop %v1535
        %v1537 = vadd.f32 %v1534, 1.0
        %v1538 = vadd.f32 %v1536, 1.0
        %v1539 = vrcp.pop %v1537
        %v1540 = vmul.f32 1.0, %v1539
        %v1541 = vrcp.pop %v1538
        %v1542 = vmul.f32 1.0, %v1541
        %v1543 = vmul.f32 %v1525, %v1540
        %v1544 = vmul.f32 %v1528, %v1542
        %v1545 = vpack.c.bf16 %v1544, %v1543
        %v1547 = vunpack.c.l.b16 %v1545
        %v1548 = vunpack.c.h.b16 %v1545
        %v1549 = vpack.c.b16 %v1547, %v1547
        %v1550 = vpack.c.b16 %v1548, %v1548
        %v1552 = vshrl.u32 %v1549, 16
        %v1554 = vrot.slane %v1552, 7
        %v1555 = vshll.u32 %v1549, 16
        %v1557 = vor.u32 %v1554, %v1555
        %v1558 = vrot.slane %v1554, 4
        %v1560 = vshrl.u32 %v1550, 16
        %v1562 = vrot.slane %v1560, 7
        %v1563 = vshll.u32 %v1550, 16
        %v1565 = vor.u32 %v1562, %v1563
        %v1566 = vsel %vm682, %v1558, %v1565
        %v1567 = vrot.slane %v1562, 4
        %v1571 = vld [vmem:[#allocation5] sm:$0xf]
        %v1572 = vsel %vm1209, %v1557, %v1571
        %1573 = vst [vmem:[#allocation5] sm:$0xf] %v1572
        %1574 = vst [vmem:[#allocation5 + $0x4] sm:$0xf] %v1566
        %v1575 = vld [vmem:[#allocation5 + $0x8] sm:$0x1]
        %v1576 = vsel %vm525, %v1567, %v1575
        %1577 = vst [vmem:[#allocation5 + $0x8] sm:$0x1] %v1576
        %v1578 = vld [vmem:[#allocation5] sm:$0xf]
        %v1579 = vld [vmem:[#allocation5 + $0x4] sm:$0xf]
        %v1580 = vld [vmem:[#allocation5 + $0x8] sm:$0x1]
        %v1581 = vld [vmem:[#allocation5] sm:$0xe]
        %v1584 = vunpack.c.l.b16 %v1578
        %v1585 = vunpack.c.l.b16 %v1579
        %v1586 = vpack.c.b16 %v1585, %v1584
        %v1589 = vunpack.c.l.b16 %v1580
        %v1590 = vpack.c.b16 %v1589, %v1589
        %v1592 = vshrl.u32 %v1586, 16
        %v1594 = vshll.u32 %v1586, 16
        %v1596 = vrot.slane %v1594, 1
        %v1597 = vor.u32 %v1592, %v1596
        %v1599 = vshll.u32 %v1590, 16
        %v1601 = vrot.slane %v1599, 1
        %v1602 = vsel %vm754, %v1597, %v1601
        %v1605 = vunpack.c.l.b16 %v1581
        %v1606 = vpack.c.b16 %v1585, %v1605
        %v1607 = vrot.slane %v1606, 1
        %v1608 = vrot.slane %v1590, 1
        %v1609 = vsel %vm782, %v1607, %v1608
        %v1611 = vld [vmem:[%s2] sm:$0xf]
        %v1613 = vsel %vm792, %v1611, 0
        %1615 = vmatprep.subr.bf16.mxu0 %v1602
        %1616 = vmatpush1.bf16.msra.mxu0 %v1586
        %1617 = vmatprep.subr.bf16.mxu0 0
        %1618 = vmatpush1.bf16.msra.mxu0 0
        %1619 = vmatprep.subr.bf16.mxu0 0
        %1620 = vmatpush1.bf16.msra.mxu0 0
        %1621 = vmatprep.subr.bf16.mxu0 0
        %1622 = vmatpush1.bf16.msra.mxu0 0
        %1623 = vmatprep.subr.bf16.mxu0 0
        %1624 = vmatpush1.bf16.msra.mxu0 0
        %1625 = vmatprep.subr.bf16.mxu0 0
        %1626 = vmatpush1.bf16.msra.mxu0 0
        %1627 = vmatprep.subr.bf16.mxu0 0
        %1628 = vmatpush1.bf16.msra.mxu0 0
        %1629 = vmatprep.subr.bf16.mxu0 0
        %1630 = vmatpush1.bf16.msra.mxu0 0
        %1631 = vmatprep.subr.bf16.mxu0 0
        %1632 = vmatpush1.bf16.msra.mxu0 0
        %1633 = vmatprep.subr.bf16.mxu0 0
        %1634 = vmatpush1.bf16.msra.mxu0 0
        %1635 = vmatprep.subr.bf16.mxu0 0
        %1636 = vmatpush1.bf16.msra.mxu0 0
        %1637 = vmatprep.subr.bf16.mxu0 0
        %1638 = vmatpush1.bf16.msra.mxu0 0
        %1639 = vmatprep.subr.bf16.mxu0 0
        %1640 = vmatpush1.bf16.msra.mxu0 0
        %1641 = vmatprep.subr.bf16.mxu0 0
        %1642 = vmatpush1.bf16.msra.mxu0 0
        %1643 = vmatprep.subr.bf16.mxu0 0
        %1644 = vmatpush1.bf16.msra.mxu0 0
        %1645 = vmatprep.subr.bf16.mxu0 0
        %1646 = vmatpush1.bf16.msra.mxu0 0
        %1647 = vmatprep.mubr.bf16.mxu0 0
        %1648 = vmatmul.mubr.bf16.gmra.mrb[0].mxu0 %v1613
        %v1649 = vpop.f32.mrb[0].mxu0
        %v1650 = vadd.f32 0.0, %v1649
        %v1651 = vpop.f32.mrb[0].mxu0
        %v1652 = vadd.f32 0.0, %v1651
        %v1653 = vpop.f32.mrb[0].mxu0
        %v1654 = vpop.f32.mrb[0].mxu0
        %1655 = vdwg.mxu0
        %1656 = vmatprep.subr.bf16.mxu0 0
        %1657 = vmatpush1.bf16.msra.mxu0 %v1609
        %1658 = vmatprep.subr.bf16.mxu0 0
        %1659 = vmatpush1.bf16.msra.mxu0 0
        %1660 = vmatprep.subr.bf16.mxu0 0
        %1661 = vmatpush1.bf16.msra.mxu0 0
        %1662 = vmatprep.subr.bf16.mxu0 0
        %1663 = vmatpush1.bf16.msra.mxu0 0
        %1664 = vmatprep.subr.bf16.mxu0 0
        %1665 = vmatpush1.bf16.msra.mxu0 0
        %1666 = vmatprep.subr.bf16.mxu0 0
        %1667 = vmatpush1.bf16.msra.mxu0 0
        %1668 = vmatprep.subr.bf16.mxu0 0
        %1669 = vmatpush1.bf16.msra.mxu0 0
        %1670 = vmatprep.subr.bf16.mxu0 0
        %1671 = vmatpush1.bf16.msra.mxu0 0
        %1672 = vmatprep.subr.bf16.mxu0 0
        %1673 = vmatpush1.bf16.msra.mxu0 0
        %1674 = vmatprep.subr.bf16.mxu0 0
        %1675 = vmatpush1.bf16.msra.mxu0 0
        %1676 = vmatprep.subr.bf16.mxu0 0
        %1677 = vmatpush1.bf16.msra.mxu0 0
        %1678 = vmatprep.subr.bf16.mxu0 0
        %1679 = vmatpush1.bf16.msra.mxu0 0
        %1680 = vmatprep.subr.bf16.mxu0 0
        %1681 = vmatpush1.bf16.msra.mxu0 0
        %1682 = vmatprep.subr.bf16.mxu0 0
        %1683 = vmatpush1.bf16.msra.mxu0 0
        %1684 = vmatprep.subr.bf16.mxu0 0
        %1685 = vmatpush1.bf16.msra.mxu0 0
        %1686 = vmatprep.subr.bf16.mxu0 0
        %1687 = vmatpush1.bf16.msra.mxu0 0
        %1688 = vmatprep.mubr.bf16.mxu0 0
        %1689 = vmatmul.mubr.bf16.gmra.mrb[0].mxu0 %v1613
        %v1690 = vpop.f32.mrb[0].mxu0
        %v1691 = vadd.f32 0.0, %v1690
        %v1692 = vpop.f32.mrb[0].mxu0
        %v1693 = vpop.f32.mrb[0].mxu0
        %v1694 = vpop.f32.mrb[0].mxu0
        %1695 = vdwg.mxu0
        %v1696 = vpack.c.bf16 %v1650, %v1650
        %v1697 = vpack.c.bf16 %v1652, %v1652
        %v1698 = vpack.c.bf16 %v1691, %v1691
        %v1699 = vld [vmem:[%s11] sm:$0xff]
        %v1700 = vld [vmem:[%s11 + $0x8] sm:$0xff]
        %v1701 = vld [vmem:[%s11 + $0x10] sm:$0xff]
        %v1702 = vld [vmem:[%s11 + $0x18] sm:$0xff]
        %v1703 = vld [vmem:[%s11 + $0x20] sm:$0xff]
        %v1704 = vld [vmem:[%s11 + $0x28] sm:$0xff]
        %v1705 = vld [vmem:[%s11 + $0x30] sm:$0xff]
        %v1706 = vld [vmem:[%s11 + $0x38] sm:$0xff]
        %v1707 = vld [vmem:[%s11 + $0x40] sm:$0xff]
        %v1708 = vld [vmem:[%s11 + $0x48] sm:$0xff]
        %v1709 = vld [vmem:[%s11 + $0x50] sm:$0xff]
        %v1710 = vld [vmem:[%s11 + $0x58] sm:$0xff]
        %v1711 = vld [vmem:[%s11 + $0x60] sm:$0xff]
        %v1712 = vld [vmem:[%s11 + $0x68] sm:$0xff]
        %v1713 = vld [vmem:[%s11 + $0x70] sm:$0xff]
        %v1714 = vld [vmem:[%s11 + $0x78] sm:$0xff]
        %v1715 = vld [vmem:[%s11 + $0x80] sm:$0xff]
        %v1716 = vld [vmem:[%s11 + $0x88] sm:$0xff]
        %v1717 = vld [vmem:[%s11 + $0x90] sm:$0xff]
        %v1718 = vld [vmem:[%s11 + $0x98] sm:$0xff]
        %v1719 = vld [vmem:[%s11 + $0xa0] sm:$0xff]
        %v1720 = vld [vmem:[%s11 + $0xa8] sm:$0xff]
        %v1721 = vld [vmem:[%s11 + $0xb0] sm:$0xff]
        %v1722 = vld [vmem:[%s11 + $0xb8] sm:$0xff]
        %v1723 = vld [vmem:[%s11 + $0xc0] sm:$0xff]
        %v1724 = vld [vmem:[%s11 + $0xc8] sm:$0xff]
        %v1725 = vld [vmem:[%s11 + $0xd0] sm:$0xff]
        %v1726 = vld [vmem:[%s11 + $0xd8] sm:$0xff]
        %v1727 = vld [vmem:[%s11 + $0xe0] sm:$0xff]
        %v1728 = vld [vmem:[%s11 + $0xe8] sm:$0xff]
        %v1729 = vld [vmem:[%s11 + $0xf0] sm:$0xff]
        %v1730 = vld [vmem:[%s11 + $0xf8] sm:$0xff]
        %v1731 = vld [vmem:[%s11 + $0x100] sm:$0xff]
        %v1732 = vld [vmem:[%s11 + $0x108] sm:$0xff]
        %v1733 = vld [vmem:[%s11 + $0x110] sm:$0xff]
        %v1734 = vld [vmem:[%s11 + $0x118] sm:$0xff]
        %v1735 = vld [vmem:[%s11 + $0x120] sm:$0xff]
        %v1736 = vld [vmem:[%s11 + $0x128] sm:$0xff]
        %v1737 = vld [vmem:[%s11 + $0x130] sm:$0xff]
        %v1738 = vld [vmem:[%s11 + $0x138] sm:$0xff]
        %v1739 = vld [vmem:[%s11 + $0x140] sm:$0xff]
        %v1740 = vld [vmem:[%s11 + $0x148] sm:$0xff]
        %v1741 = vld [vmem:[%s11 + $0x150] sm:$0xff]
        %v1742 = vld [vmem:[%s11 + $0x158] sm:$0xff]
        %v1743 = vld [vmem:[%s11 + $0x160] sm:$0xff]
        %v1744 = vld [vmem:[%s11 + $0x168] sm:$0xff]
        %v1745 = vld [vmem:[%s11 + $0x170] sm:$0xff]
        %v1746 = vld [vmem:[%s11 + $0x178] sm:$0xff]
        %v1747 = vld [vmem:[#allocation13] sm:$0x3]
        %v1749 = vlaneseq
        %v1750 = vshrl.u32 %v1749, 7
        %v1751 = vsub.s32 0, %v1750
        %v1752 = vrot.slane %v1747, %v1751
        %v1753 = vlaneseq
        %v1754 = vshrl.u32 %v1753, 7
        %v1755 = vsub.s32 1, %v1754
        %v1756 = vrot.slane %v1747, %v1755
        %v1807 = vunpack.c.l.b16 %v1699
        %v1808 = vunpack.c.h.b16 %v1699
        %v1809 = vunpack.c.l.b16 %v1700
        %v1810 = vunpack.c.h.b16 %v1700
        %v1811 = vunpack.c.l.b16 %v1701
        %v1812 = vunpack.c.h.b16 %v1701
        %v1813 = vunpack.c.l.b16 %v1702
        %v1814 = vunpack.c.h.b16 %v1702
        %v1815 = vunpack.c.l.b16 %v1703
        %v1816 = vunpack.c.h.b16 %v1703
        %v1817 = vunpack.c.l.b16 %v1704
        %v1818 = vunpack.c.h.b16 %v1704
        %v1819 = vunpack.c.l.b16 %v1705
        %v1820 = vunpack.c.h.b16 %v1705
        %v1821 = vunpack.c.l.b16 %v1706
        %v1822 = vunpack.c.h.b16 %v1706
        %v1823 = vunpack.c.l.b16 %v1707
        %v1824 = vunpack.c.h.b16 %v1707
        %v1825 = vunpack.c.l.b16 %v1708
        %v1826 = vunpack.c.h.b16 %v1708
        %v1827 = vunpack.c.l.b16 %v1709
        %v1828 = vunpack.c.h.b16 %v1709
        %v1829 = vunpack.c.l.b16 %v1710
        %v1830 = vunpack.c.h.b16 %v1710
        %v1831 = vunpack.c.l.b16 %v1711
        %v1832 = vunpack.c.h.b16 %v1711
        %v1833 = vunpack.c.l.b16 %v1712
        %v1834 = vunpack.c.h.b16 %v1712
        %v1835 = vunpack.c.l.b16 %v1713
        %v1836 = vunpack.c.h.b16 %v1713
        %v1837 = vunpack.c.l.b16 %v1714
        %v1838 = vunpack.c.h.b16 %v1714
        %v1839 = vunpack.c.l.b16 %v1715
        %v1840 = vunpack.c.h.b16 %v1715
        %v1841 = vunpack.c.l.b16 %v1716
        %v1842 = vunpack.c.h.b16 %v1716
        %v1843 = vunpack.c.l.b16 %v1717
        %v1844 = vunpack.c.h.b16 %v1717
        %v1845 = vunpack.c.l.b16 %v1718
        %v1846 = vunpack.c.h.b16 %v1718
        %v1847 = vunpack.c.l.b16 %v1719
        %v1848 = vunpack.c.h.b16 %v1719
        %v1849 = vunpack.c.l.b16 %v1720
        %v1850 = vunpack.c.h.b16 %v1720
        %v1851 = vunpack.c.l.b16 %v1721
        %v1852 = vunpack.c.h.b16 %v1721
        %v1853 = vunpack.c.l.b16 %v1722
        %v1854 = vunpack.c.h.b16 %v1722
        %v1855 = vunpack.c.l.b16 %v1723
        %v1856 = vunpack.c.h.b16 %v1723
        %v1857 = vunpack.c.l.b16 %v1724
        %v1858 = vunpack.c.h.b16 %v1724
        %v1859 = vunpack.c.l.b16 %v1725
        %v1860 = vunpack.c.h.b16 %v1725
        %v1861 = vunpack.c.l.b16 %v1726
        %v1862 = vunpack.c.h.b16 %v1726
        %v1863 = vunpack.c.l.b16 %v1727
        %v1864 = vunpack.c.h.b16 %v1727
        %v1865 = vunpack.c.l.b16 %v1728
        %v1866 = vunpack.c.h.b16 %v1728
        %v1867 = vunpack.c.l.b16 %v1729
        %v1868 = vunpack.c.h.b16 %v1729
        %v1869 = vunpack.c.l.b16 %v1730
        %v1870 = vunpack.c.h.b16 %v1730
        %v1871 = vunpack.c.l.b16 %v1731
        %v1872 = vunpack.c.h.b16 %v1731
        %v1873 = vunpack.c.l.b16 %v1732
        %v1874 = vunpack.c.h.b16 %v1732
        %v1875 = vunpack.c.l.b16 %v1733
        %v1876 = vunpack.c.h.b16 %v1733
        %v1877 = vunpack.c.l.b16 %v1734
        %v1878 = vunpack.c.h.b16 %v1734
        %v1879 = vunpack.c.l.b16 %v1735
        %v1880 = vunpack.c.h.b16 %v1735
        %v1881 = vunpack.c.l.b16 %v1736
        %v1882 = vunpack.c.h.b16 %v1736
        %v1883 = vunpack.c.l.b16 %v1737
        %v1884 = vunpack.c.h.b16 %v1737
        %v1885 = vunpack.c.l.b16 %v1738
        %v1886 = vunpack.c.h.b16 %v1738
        %v1887 = vunpack.c.l.b16 %v1739
        %v1888 = vunpack.c.h.b16 %v1739
        %v1889 = vunpack.c.l.b16 %v1740
        %v1890 = vunpack.c.h.b16 %v1740
        %v1891 = vunpack.c.l.b16 %v1741
        %v1892 = vunpack.c.h.b16 %v1741
        %v1893 = vunpack.c.l.b16 %v1742
        %v1894 = vunpack.c.h.b16 %v1742
        %v1895 = vunpack.c.l.b16 %v1743
        %v1896 = vunpack.c.h.b16 %v1743
        %v1897 = vunpack.c.l.b16 %v1744
        %v1898 = vunpack.c.h.b16 %v1744
        %v1899 = vunpack.c.l.b16 %v1745
        %v1900 = vunpack.c.h.b16 %v1745
        %v1901 = vunpack.c.l.b16 %v1746
        %v1902 = vunpack.c.h.b16 %v1746
        %v1903 = vpack.c.b16 %v1809, %v1807
        %v1904 = vpack.c.b16 %v1810, %v1808
        %v1905 = vpack.c.b16 %v1813, %v1811
        %v1906 = vpack.c.b16 %v1814, %v1812
        %v1907 = vpack.c.b16 %v1817, %v1815
        %v1908 = vpack.c.b16 %v1818, %v1816
        %v1909 = vpack.c.b16 %v1821, %v1819
        %v1910 = vpack.c.b16 %v1822, %v1820
        %v1911 = vpack.c.b16 %v1825, %v1823
        %v1912 = vpack.c.b16 %v1826, %v1824
        %v1913 = vpack.c.b16 %v1829, %v1827
        %v1914 = vpack.c.b16 %v1830, %v1828
        %v1915 = vpack.c.b16 %v1833, %v1831
        %v1916 = vpack.c.b16 %v1834, %v1832
        %v1917 = vpack.c.b16 %v1837, %v1835
        %v1918 = vpack.c.b16 %v1838, %v1836
        %v1919 = vpack.c.b16 %v1841, %v1839
        %v1920 = vpack.c.b16 %v1842, %v1840
        %v1921 = vpack.c.b16 %v1845, %v1843
        %v1922 = vpack.c.b16 %v1846, %v1844
        %v1923 = vpack.c.b16 %v1849, %v1847
        %v1924 = vpack.c.b16 %v1850, %v1848
        %v1925 = vpack.c.b16 %v1853, %v1851
        %v1926 = vpack.c.b16 %v1854, %v1852
        %v1927 = vpack.c.b16 %v1857, %v1855
        %v1928 = vpack.c.b16 %v1858, %v1856
        %v1929 = vpack.c.b16 %v1861, %v1859
        %v1930 = vpack.c.b16 %v1862, %v1860
        %v1931 = vpack.c.b16 %v1865, %v1863
        %v1932 = vpack.c.b16 %v1866, %v1864
        %v1933 = vpack.c.b16 %v1869, %v1867
        %v1934 = vpack.c.b16 %v1870, %v1868
        %v1935 = vpack.c.b16 %v1873, %v1871
        %v1936 = vpack.c.b16 %v1874, %v1872
        %v1937 = vpack.c.b16 %v1877, %v1875
        %v1938 = vpack.c.b16 %v1878, %v1876
        %v1939 = vpack.c.b16 %v1881, %v1879
        %v1940 = vpack.c.b16 %v1882, %v1880
        %v1941 = vpack.c.b16 %v1885, %v1883
        %v1942 = vpack.c.b16 %v1886, %v1884
        %v1943 = vpack.c.b16 %v1889, %v1887
        %v1944 = vpack.c.b16 %v1890, %v1888
        %v1945 = vpack.c.b16 %v1893, %v1891
        %v1946 = vpack.c.b16 %v1894, %v1892
        %v1947 = vpack.c.b16 %v1897, %v1895
        %v1948 = vpack.c.b16 %v1898, %v1896
        %v1949 = vpack.c.b16 %v1901, %v1899
        %v1950 = vpack.c.b16 %v1902, %v1900
        %1999 = vmatprep.subr.bf16.mxu0 %v1904
        %2000 = vmatpush1.bf16.msra.mxu0 %v1903
        %2001 = vmatprep.subr.bf16.mxu0 %v1906
        %2002 = vmatpush1.bf16.msra.mxu0 %v1905
        %2003 = vmatprep.subr.bf16.mxu0 %v1908
        %2004 = vmatpush1.bf16.msra.mxu0 %v1907
        %2005 = vmatprep.subr.bf16.mxu0 %v1910
        %2006 = vmatpush1.bf16.msra.mxu0 %v1909
        %2007 = vmatprep.subr.bf16.mxu0 %v1912
        %2008 = vmatpush1.bf16.msra.mxu0 %v1911
        %2009 = vmatprep.subr.bf16.mxu0 %v1914
        %2010 = vmatpush1.bf16.msra.mxu0 %v1913
        %2011 = vmatprep.subr.bf16.mxu0 %v1916
        %2012 = vmatpush1.bf16.msra.mxu0 %v1915
        %2013 = vmatprep.subr.bf16.mxu0 %v1918
        %2014 = vmatpush1.bf16.msra.mxu0 %v1917
        %2015 = vmatprep.subr.bf16.mxu0 %v1920
        %2016 = vmatpush1.bf16.msra.mxu0 %v1919
        %2017 = vmatprep.subr.bf16.mxu0 %v1922
        %2018 = vmatpush1.bf16.msra.mxu0 %v1921
        %2019 = vmatprep.subr.bf16.mxu0 %v1924
        %2020 = vmatpush1.bf16.msra.mxu0 %v1923
        %2021 = vmatprep.subr.bf16.mxu0 %v1926
        %2022 = vmatpush1.bf16.msra.mxu0 %v1925
        %2023 = vmatprep.subr.bf16.mxu0 %v1928
        %2024 = vmatpush1.bf16.msra.mxu0 %v1927
        %2025 = vmatprep.subr.bf16.mxu0 %v1930
        %2026 = vmatpush1.bf16.msra.mxu0 %v1929
        %2027 = vmatprep.subr.bf16.mxu0 %v1932
        %2028 = vmatpush1.bf16.msra.mxu0 %v1931
        %2029 = vmatprep.subr.bf16.mxu0 %v1934
        %2030 = vmatpush1.bf16.msra.mxu0 %v1933
        %2031 = vmatprep.mubr.bf16.mxu0 %v1697
        %2032 = vmatmul.mubr.bf16.gmra.mrb[0].mxu0 %v1696
        %v2033 = vpop.f32.mrb[0].mxu0
        %v2034 = vadd.f32 %v1752, %v2033
        %v2035 = vpop.f32.mrb[0].mxu0
        %v2036 = vadd.f32 %v1756, %v2035
        %v2037 = vpop.f32.mrb[0].mxu0
        %v2038 = vpop.f32.mrb[0].mxu0
        %2039 = vdwg.mxu0
        %2040 = vmatprep.subr.bf16.mxu0 %v1936
        %2041 = vmatpush1.bf16.msra.mxu0 %v1935
        %2042 = vmatprep.subr.bf16.mxu0 %v1938
        %2043 = vmatpush1.bf16.msra.mxu0 %v1937
        %2044 = vmatprep.subr.bf16.mxu0 %v1940
        %2045 = vmatpush1.bf16.msra.mxu0 %v1939
        %2046 = vmatprep.subr.bf16.mxu0 %v1942
        %2047 = vmatpush1.bf16.msra.mxu0 %v1941
        %2048 = vmatprep.subr.bf16.mxu0 %v1944
        %2049 = vmatpush1.bf16.msra.mxu0 %v1943
        %2050 = vmatprep.subr.bf16.mxu0 %v1946
        %2051 = vmatpush1.bf16.msra.mxu0 %v1945
        %2052 = vmatprep.subr.bf16.mxu0 %v1948
        %2053 = vmatpush1.bf16.msra.mxu0 %v1947
        %2054 = vmatprep.subr.bf16.mxu0 %v1950
        %2055 = vmatpush1.bf16.msra.mxu0 %v1949
        %2056 = vmatprep.subr.bf16.mxu0 0
        %2057 = vmatpush1.bf16.msra.mxu0 0
        %2058 = vmatprep.subr.bf16.mxu0 0
        %2059 = vmatpush1.bf16.msra.mxu0 0
        %2060 = vmatprep.subr.bf16.mxu0 0
        %2061 = vmatpush1.bf16.msra.mxu0 0
        %2062 = vmatprep.subr.bf16.mxu0 0
        %2063 = vmatpush1.bf16.msra.mxu0 0
        %2064 = vmatprep.subr.bf16.mxu0 0
        %2065 = vmatpush1.bf16.msra.mxu0 0
        %2066 = vmatprep.subr.bf16.mxu0 0
        %2067 = vmatpush1.bf16.msra.mxu0 0
        %2068 = vmatprep.subr.bf16.mxu0 0
        %2069 = vmatpush1.bf16.msra.mxu0 0
        %2070 = vmatprep.subr.bf16.mxu0 0
        %2071 = vmatpush1.bf16.msra.mxu0 0
        %2072 = vmatprep.mubr.bf16.mxu0 0
        %2073 = vmatmul.mubr.bf16.gmra.mrb[0].mxu0 %v1698
        %v2074 = vpop.f32.mrb[0].mxu0
        %v2075 = vadd.f32 %v2034, %v2074
        %v2076 = vpop.f32.mrb[0].mxu0
        %v2077 = vadd.f32 %v2036, %v2076
        %v2078 = vpop.f32.mrb[0].mxu0
        %v2079 = vpop.f32.mrb[0].mxu0
        %2080 = vdwg.mxu0
        %2081 = vst [vmem:[%s505] sm:$0xff] %v2075
        %2082 = vst [vmem:[%s505 + $0x8] sm:$0xff] %v2077
        %p2083 = scmp.lt.s32.totalorder %s27, 1
        %s2084 = scalar_select %p2083, %s27, 1
        %s2085 = smul.addr %s2084, 2
        %s2086 = smul.addr %s2085, 8
        %s2087 = scalar_lea.vmem %s13, %s2086
        // Predicated region
        $region93: #{dynamics_extractor_forward.1} parent=71 // pred_check
          %p2088 = pneg %p323
        $region94: #{dynamics_extractor_forward.1} parent=71 // pred_check_branch
          %2090 = sbr.rel (%p2088) target = $region96
        $region95: #{dynamics_extractor_forward.1} parent=71 // pred_region
          _
        $region96: #{dynamics_extractor_forward.1} parent=71 // pred_fallthru
          _
      $region72: #{dynamics_extractor_forward.1} parent=5 // pred_fallthru
        _
      %p2091 = scmp.le.s32.totalorder 2, %s22
      // Predicated region
      $region97: #{dynamics_extractor_forward.1} parent=5 // pred_check
        %p2092 = pneg %p2091
      $region98: #{dynamics_extractor_forward.1} parent=5 // pred_check_branch
        %2094 = sbr.rel (%p2092) target = $region100
      $region99: #{dynamics_extractor_forward.1} parent=5 // pred_region
        %s2095 = ssub.s32 %s22, 2
        // Predicated region
        $region101: #{dynamics_extractor_forward.1} parent=99 // pred_check
          %p2096 = pneg %p329
        $region102: #{dynamics_extractor_forward.1} parent=99 // pred_check_branch
          %2098 = sbr.rel (%p2096) target = $region104
        $region103: #{dynamics_extractor_forward.1} parent=99 // pred_region
          %p2099 = scmp.lt.s32.totalorder %s28, 1
          %s2100 = scalar_select %p2099, %s28, 1
          %s2101 = smul.addr %s2100, 2
          %s2102 = smul.addr %s2101, 8
          %s2103 = scalar_lea.vmem %s13, %s2102
        $region104: #{dynamics_extractor_forward.1} parent=99 // pred_fallthru
          _
      $region100: #{dynamics_extractor_forward.1} parent=5 // pred_fallthru
        _
    $region6: #{dynamics_extractor_forward.1} parent=1 // loop_footer
      %s26 = sadd.s32 1, %s22
    $region7: #{dynamics_extractor_forward.1} parent=1 // loop_footer_branch
      %21 = sbr.rel target = $region3
    $region8: #{dynamics_extractor_forward.1} parent=1 // loop_exit
      _
    %2104 = vsyncpa [#allocation7], 1
    %s2105 = scalar_lea.sflag [#allocation7], 1
    %2106 = vsyncpa %s2105, 1
    %2107 = vsyncpa [#allocation9], 1
    %2108 = vsyncpa [#allocation12], 1

</llo_original>
